<compile_context>
chip_gen: v7x
topology: tpu7x:2x2x1
jax: 0.10.0
libtpu: 0.0.40
codegen_flags: <defaults>
</compile_context>

<pallas_src>
import jax
import jax.numpy as jnp
from jax import lax
from jax.experimental import pallas as pl
from jax.experimental.pallas import tpu as pltpu


def _round_up(x, m):
    return (x + m - 1) // m * m


_STATIC_CHUNK_UNROLL = 4   # statically unroll the vocab-chunk loop up to this count


def _embed_gather_kernel(idx_ref, table_ref, out_ref, acc_ref):
    """Vocab-chunked, transposed one-hot-matmul gather.

    idx_ref   : (G, TR) int32       idx_ref[j, r] = padded-table row for flattened
                                    output row r*G + j of this block.
    table_ref : (C, D_pad, VC)      vocab-chunked, transposed table (VMEM resident).
    out_ref   : (TR, G*D_pad)       lane-dense output block.
    acc_ref   : (G*D_pad, TR) f32   transposed accumulator scratch.
    """
    num_chunks, d_pad, vc = table_ref.shape
    g, tr = idx_ref.shape

    acc_ref[...] = jnp.zeros_like(acc_ref)

    # Hoisted: in-chunk vocab id on sublanes, broadcast along lanes (block rows).
    viota = lax.broadcasted_iota(jnp.int32, (vc, tr), 0)
    cdtype = table_ref.dtype

    def process_chunk(c):
        tchunk = table_ref[c]                    # (D_pad, VC)
        base = c * vc
        for j in range(g):                       # static unroll; g = 128 // D_pad
            rel = idx_ref[j:j + 1, :] - base     # (1, TR), in-chunk index (or miss)
            onehot_t = (viota == rel).astype(cdtype)          # (VC, TR)
            # MXU: M = D_pad, K = VC, N = TR >= 128 -> dense output columns.
            acc_ref[j * d_pad:(j + 1) * d_pad, :] += jnp.dot(
                tchunk, onehot_t, preferred_element_type=jnp.float32)

    if num_chunks <= _STATIC_CHUNK_UNROLL:
        for c in range(num_chunks):
            process_chunk(c)
    else:
        @pl.loop(0, num_chunks)
        def _(c):
            process_chunk(c)

    # Repack (G*D_pad, TR) -> (TR, G*D_pad): one XLU transpose, full-lane store.
    out_ref[...] = acc_ref[...].T.astype(out_ref.dtype)


def prepare_tabular_embedding(table, *, vocab_chunk=512, compute_dtype=None):
    """One-time (per-parameter) preprocessing of the concatenated embedding table.

    Returns (table3, meta):
      table3 : (num_chunks, D_pad, VC) transposed, vocab-chunked, padded table
               (lane-dense: vocab on lanes). Optionally cast to compute_dtype
               (e.g. jnp.bfloat16 for 3-8x MXU rate; output is then rounded).
      meta   : layout constants consumed by tabular_embedding_prepared().
    """
    V, D = table.shape
    if D <= 128:
        d_pad = max(8, int(pl.next_power_of_2(D)))   # a divisor of 128, >= 8
        g = 128 // d_pad
    else:
        d_pad = _round_up(D, 128)
        g = 1
    vc = min(_round_up(vocab_chunk, 128), _round_up(V, 128))
    v_pad = _round_up(V, vc)
    num_chunks = v_pad // vc

    cdtype = jnp.dtype(compute_dtype) if compute_dtype is not None else jnp.dtype(table.dtype)
    t = jnp.pad(table.astype(cdtype), ((0, v_pad - V), (0, d_pad - D)))
    # (V_pad, D_pad) -> (D_pad, V_pad) -> (num_chunks, D_pad, VC)
    table3 = t.T.reshape(d_pad, num_chunks, vc).transpose(1, 0, 2)

    meta = dict(V=V, D=D, d_pad=d_pad, g=g, vc=vc, v_pad=v_pad,
                num_chunks=num_chunks, out_dtype=jnp.dtype(table.dtype))
    return table3, meta


def tabular_embedding_prepared(x, offsets, table3, meta, *, tile_rows=4096):
    """x: [B, F] int32, offsets: [F], prepared table -> [B, F, D]."""
    B, F = x.shape
    V, D = meta["V"], meta["D"]
    d_pad, g, vc = meta["d_pad"], meta["g"], meta["vc"]
    num_chunks = meta["num_chunks"]
    out_dtype = meta["out_dtype"]
    out_cols = g * d_pad
    N = B * F

    # Per-feature offset + clamp (documented difference: no error on bad index).
    gidx = jnp.clip(
        x.astype(jnp.int32) + jnp.asarray(offsets, jnp.int32)[None, :], 0, V - 1
    ).reshape(N)

    # Row-block size: TR = TN // g must be a multiple of 128 (lane-dense output
    # block, MXU N >= 128, aligned index block).
    step = 128 * g
    tn_req = max(step, _round_up(tile_rows, step))
    # Keep >= 2 grid blocks when there is enough work so v7x's two TensorCores
    # both get a share under dimension_semantics=("parallel",).
    tn_cap = _round_up(pl.cdiv(N, 2), step) if N > step else step
    tn = min(tn_req, tn_cap)

    n_pad = _round_up(N, tn)
    if n_pad > N:
        gidx = jnp.pad(gidx, (0, n_pad - N))       # pad with row 0 (valid, sliced off)
    tr = tn // g
    idx_t = gidx.reshape(n_pad // g, g).T          # (g, n_pad//g); idx_t[j, q] = gidx[q*g + j]
    grid = (n_pad // tn,)

    # --- generation-aware VMEM budget (per-TensorCore) ----------------------
    c_item = jnp.dtype(table3.dtype).itemsize
    o_item = jnp.dtype(out_dtype).itemsize
    table_bytes = num_chunks * d_pad * vc * c_item       # resident, single-buffered
    idx_bytes = 2 * max(g, 8) * tr * 4                   # double-buffered, sublane-padded
    out_bytes = 2 * tr * out_cols * o_item                # double-buffered
    acc_bytes = out_cols * tr * 4                         # f32 scratch
    onehot_bytes = 2 * vc * tr * c_item                   # live one-hot (+ headroom)
    chunk_bytes = 2 * d_pad * vc * c_item
    needed = table_bytes + idx_bytes + out_bytes + acc_bytes + onehot_bytes + chunk_bytes
    needed = int(needed * 1.25) + (1 << 20)               # Mosaic internal scratch / spill margin
    try:
        vmem_cap = int(pltpu.get_tpu_info().vmem_capacity_bytes)
    except Exception:
        vmem_cap = 64 * 2 ** 20                            # conservative (v7x per-TC)
    assert needed <= int(0.75 * vmem_cap), (
        f"embedding table / tiles too large for the VMEM-resident gather path "
        f"(need ~{needed >> 20} MiB of ~{vmem_cap >> 20} MiB VMEM); reduce "
        f"tile_rows / vocab_chunk.")
    # TODO(synk): add an HBM-streaming path (table in pl.ANY + manual per-chunk
    # DMA double-buffering) for vocab tables that do not fit VMEM-resident.
    vmem_limit = int(min(max(needed, 32 * 2 ** 20), int(0.9 * vmem_cap)))

    def build(table_pipeline_mode):
        if table_pipeline_mode is None:
            table_spec = pl.BlockSpec((num_chunks, d_pad, vc), lambda i: (0, 0, 0))
        else:
            table_spec = pl.BlockSpec((num_chunks, d_pad, vc), lambda i: (0, 0, 0),
                                      pipeline_mode=table_pipeline_mode)
        return pl.pallas_call(
            _embed_gather_kernel,
            out_shape=jax.ShapeDtypeStruct((n_pad // g, out_cols), out_dtype),
            grid_spec=pltpu.PrefetchScalarGridSpec(
                num_scalar_prefetch=0,
                grid=grid,
                in_specs=[
                    pl.BlockSpec((g, tr), lambda i: (0, i)),   # indices (transposed layout)
                    table_spec,                                # resident table
                ],
                out_specs=pl.BlockSpec((tr, out_cols), lambda i: (i, 0)),
                scratch_shapes=[pltpu.VMEM((out_cols, tr), jnp.float32)],
            ),
            compiler_params=pltpu.CompilerParams(
                dimension_semantics=("parallel",),
                vmem_limit_bytes=vmem_limit,
            ),
        )

    try:
        # Constant-index table block: single-buffer it (saves one full table copy).
        out2d = build(pl.Buffered(1))(idx_t, table3)
    except Exception:
        out2d = build(None)(idx_t, table3)     # fallback: default double-buffering

    # (n_pad//g, g*D_pad) -> (n_pad, D_pad) is a pure row-major view; drop padding.
    return out2d.reshape(n_pad, d_pad)[:N, :D].reshape(B, F, D)


def tabular_embedding(x, table, offsets, *, tile_rows=4096, vocab_chunk=512,
                      compute_dtype=None):
    """Convenience wrapper: prepares the table per call (prefer preparing once)."""
    table3, meta = prepare_tabular_embedding(
        table, vocab_chunk=vocab_chunk, compute_dtype=compute_dtype)
    return tabular_embedding_prepared(x, offsets, table3, meta, tile_rows=tile_rows)


if __name__ == "__main__":
    key = jax.random.PRNGKey(0)

    def run_case(cat_dims, embed_dim, batch, key, vocab_chunk=512):
        F = len(cat_dims)
        offs, acc = [], 0
        for c in cat_dims:
            offs.append(acc)
            acc += c
        offsets = jnp.asarray(offs, jnp.int32)
        V = acc

        key, tkey = jax.random.split(key)
        table = jax.random.normal(tkey, (V, embed_dim), dtype=jnp.float32)

        cols = []
        for c in cat_dims:
            key, sub = jax.random.split(key)
            cols.append(jax.random.randint(sub, (batch,), 0, c, dtype=jnp.int32))
        x = jnp.stack(cols, axis=1)  # [B, F]

        # One-time parameter prep (hoisted out of the per-step path).
        table3, meta = prepare_tabular_embedding(table, vocab_chunk=vocab_chunk)
        out = tabular_embedding_prepared(x, offsets, table3, meta)
        out = jax.block_until_ready(out)

        # Pure-JAX reference (same semantics as the PyTorch forward).
        ref = jnp.take(table, x + offsets[None, :], axis=0)  # [B, F, D]
        assert out.shape == (batch, F, embed_dim)
        # One-hot f32 selection is exact -> require bit-exact agreement.
        assert bool(jnp.all(out == ref)), "mismatch vs reference gather"
        return key

    # Small case matching the module defaults (B=2, F=4, D=32).
    key = run_case([5, 7, 3, 11], 32, 2, key)
    # Multi-block grid (2 blocks -> both v7x TensorCores get work).
    key = run_case([13, 9, 21, 6, 17], 32, 128, key)
    # D that doesn't divide 128 (48 -> padded to 64, G=2) + 2 vocab chunks.
    key = run_case([60] * 10, 48, 32, key)
    # Many vocab chunks (VC=128, 5 chunks) -> exercises the pl.loop chunk path.
    key = run_case([70] * 8, 32, 16, key, vocab_chunk=128)

    print("KERNEL_OK")
</pallas_src>

<mosaic_0001>
module attributes {stable_mosaic.version = 11 : i64} {
  func.func @_embed_gather_kernel(%arg0: i32, %arg1: memref<4x128xi32, #tpu.memory_space<vmem>>, %arg2: memref<1x32x128xf32, #tpu.memory_space<vmem>>, %arg3: memref<128x128xf32, #tpu.memory_space<vmem>>, %arg4: memref<128x128xf32, #tpu.memory_space<vmem>>) attributes {dimension_semantics = [#tpu.dimension_semantics<parallel>], iteration_bounds = array<i64: 1>, scalar_prefetch = 0 : i64, scratch_operands = 1 : i64, tpu.core_type = #tpu.core_type<tc>, window_params = [{transform_indices = @transform_0, window_bounds = array<i64: 4, 128>}, {pipeline_mode = #tpu.pipeline_mode<synchronous>, transform_indices = @transform_1, window_bounds = array<i64: 1, 32, 128>}, {transform_indices = @transform_2, window_bounds = array<i64: 128, 128>}]} {
    %cst = arith.constant 0.000000e+00 : f32
    %0 = vector.broadcast %cst : f32 to vector<128x128xf32>
    %c0 = arith.constant 0 : index
    %c0_0 = arith.constant 0 : index
    %1 = vector.load %arg4[%c0, %c0_0] : memref<128x128xf32, #tpu.memory_space<vmem>>, vector<128x128xf32>
    tpu.vector_store %arg4[%c0, %c0_0], %0 {strides = array<i32>} : memref<128x128xf32, #tpu.memory_space<vmem>>, vector<128x128xf32>,
    %2 = tpu.iota {dimensions = array<i32: 0>} : vector<128x128xi32>
    %c0_1 = arith.constant 0 : index
    %c0_2 = arith.constant 0 : index
    %c0_3 = arith.constant 0 : index
    %3 = vector.load %arg2[%c0_1, %c0_2, %c0_3] : memref<1x32x128xf32, #tpu.memory_space<vmem>>, vector<1x32x128xf32>
    %4 = vector.shape_cast %3 : vector<1x32x128xf32> to vector<32x128xf32>
    %c0_4 = arith.constant 0 : index
    %c0_5 = arith.constant 0 : index
    %5 = vector.load %arg1[%c0_4, %c0_5] : memref<4x128xi32, #tpu.memory_space<vmem>>, vector<1x128xi32>
    %c0_i32 = arith.constant 0 : i32
    %6 = vector.broadcast %c0_i32 : i32 to vector<1x128xi32>
    %7 = arith.subi %5, %6 : vector<1x128xi32>
    %8 = vector.broadcast %7 : vector<1x128xi32> to vector<128x128xi32>
    %9 = arith.cmpi eq, %2, %8 : vector<128x128xi32>
    %10 = arith.extui %9 : vector<128x128xi1> to vector<128x128xi32>
    %11 = arith.sitofp %10 : vector<128x128xi32> to vector<128x128xf32>
    %c0_6 = arith.constant 0 : index
    %c0_7 = arith.constant 0 : index
    %12 = vector.load %arg4[%c0_6, %c0_7] : memref<128x128xf32, #tpu.memory_space<vmem>>, vector<32x128xf32>
    %cst_8 = arith.constant dense<0.000000e+00> : vector<32x128xf32>
    %13 = tpu.matmul %4, %11, %cst_8 {dimension_numbers = #tpu.dot_dimension_numbers<[1], [0], [0], [1], [0, 0, 1, 1], [], []>} : vector<32x128xf32>, vector<128x128xf32>, vector<32x128xf32> -> vector<32x128xf32>
    %14 = arith.addf %12, %13 : vector<32x128xf32>
    %c0_9 = arith.constant 0 : index
    %c0_10 = arith.constant 0 : index
    %15 = vector.load %arg4[%c0_9, %c0_10] : memref<128x128xf32, #tpu.memory_space<vmem>>, vector<32x128xf32>
    tpu.vector_store %arg4[%c0_9, %c0_10], %14 {strides = array<i32>} : memref<128x128xf32, #tpu.memory_space<vmem>>, vector<32x128xf32>,
    %c1 = arith.constant 1 : index
    %c0_11 = arith.constant 0 : index
    %16 = vector.load %arg1[%c1, %c0_11] : memref<4x128xi32, #tpu.memory_space<vmem>>, vector<1x128xi32>
    %c0_i32_12 = arith.constant 0 : i32
    %17 = vector.broadcast %c0_i32_12 : i32 to vector<1x128xi32>
    %18 = arith.subi %16, %17 : vector<1x128xi32>
    %19 = vector.broadcast %18 : vector<1x128xi32> to vector<128x128xi32>
    %20 = arith.cmpi eq, %2, %19 : vector<128x128xi32>
    %21 = arith.extui %20 : vector<128x128xi1> to vector<128x128xi32>
    %22 = arith.sitofp %21 : vector<128x128xi32> to vector<128x128xf32>
    %c32 = arith.constant 32 : index
    %c0_13 = arith.constant 0 : index
    %23 = vector.load %arg4[%c32, %c0_13] : memref<128x128xf32, #tpu.memory_space<vmem>>, vector<32x128xf32>
    %cst_14 = arith.constant dense<0.000000e+00> : vector<32x128xf32>
    %24 = tpu.matmul %4, %22, %cst_14 {dimension_numbers = #tpu.dot_dimension_numbers<[1], [0], [0], [1], [0, 0, 1, 1], [], []>} : vector<32x128xf32>, vector<128x128xf32>, vector<32x128xf32> -> vector<32x128xf32>
    %25 = arith.addf %23, %24 : vector<32x128xf32>
    %c32_15 = arith.constant 32 : index
    %c0_16 = arith.constant 0 : index
    %26 = vector.load %arg4[%c32_15, %c0_16] : memref<128x128xf32, #tpu.memory_space<vmem>>, vector<32x128xf32>
    tpu.vector_store %arg4[%c32_15, %c0_16], %25 {strides = array<i32>} : memref<128x128xf32, #tpu.memory_space<vmem>>, vector<32x128xf32>,
    %c2 = arith.constant 2 : index
    %c0_17 = arith.constant 0 : index
    %27 = vector.load %arg1[%c2, %c0_17] : memref<4x128xi32, #tpu.memory_space<vmem>>, vector<1x128xi32>
    %c0_i32_18 = arith.constant 0 : i32
    %28 = vector.broadcast %c0_i32_18 : i32 to vector<1x128xi32>
    %29 = arith.subi %27, %28 : vector<1x128xi32>
    %30 = vector.broadcast %29 : vector<1x128xi32> to vector<128x128xi32>
    %31 = arith.cmpi eq, %2, %30 : vector<128x128xi32>
    %32 = arith.extui %31 : vector<128x128xi1> to vector<128x128xi32>
    %33 = arith.sitofp %32 : vector<128x128xi32> to vector<128x128xf32>
    %c64 = arith.constant 64 : index
    %c0_19 = arith.constant 0 : index
    %34 = vector.load %arg4[%c64, %c0_19] : memref<128x128xf32, #tpu.memory_space<vmem>>, vector<32x128xf32>
    %cst_20 = arith.constant dense<0.000000e+00> : vector<32x128xf32>
    %35 = tpu.matmul %4, %33, %cst_20 {dimension_numbers = #tpu.dot_dimension_numbers<[1], [0], [0], [1], [0, 0, 1, 1], [], []>} : vector<32x128xf32>, vector<128x128xf32>, vector<32x128xf32> -> vector<32x128xf32>
    %36 = arith.addf %34, %35 : vector<32x128xf32>
    %c64_21 = arith.constant 64 : index
    %c0_22 = arith.constant 0 : index
    %37 = vector.load %arg4[%c64_21, %c0_22] : memref<128x128xf32, #tpu.memory_space<vmem>>, vector<32x128xf32>
    tpu.vector_store %arg4[%c64_21, %c0_22], %36 {strides = array<i32>} : memref<128x128xf32, #tpu.memory_space<vmem>>, vector<32x128xf32>,
    %c3 = arith.constant 3 : index
    %c0_23 = arith.constant 0 : index
    %38 = vector.load %arg1[%c3, %c0_23] : memref<4x128xi32, #tpu.memory_space<vmem>>, vector<1x128xi32>
    %c0_i32_24 = arith.constant 0 : i32
    %39 = vector.broadcast %c0_i32_24 : i32 to vector<1x128xi32>
    %40 = arith.subi %38, %39 : vector<1x128xi32>
    %41 = vector.broadcast %40 : vector<1x128xi32> to vector<128x128xi32>
    %42 = arith.cmpi eq, %2, %41 : vector<128x128xi32>
    %43 = arith.extui %42 : vector<128x128xi1> to vector<128x128xi32>
    %44 = arith.sitofp %43 : vector<128x128xi32> to vector<128x128xf32>
    %c96 = arith.constant 96 : index
    %c0_25 = arith.constant 0 : index
    %45 = vector.load %arg4[%c96, %c0_25] : memref<128x128xf32, #tpu.memory_space<vmem>>, vector<32x128xf32>
    %cst_26 = arith.constant dense<0.000000e+00> : vector<32x128xf32>
    %46 = tpu.matmul %4, %44, %cst_26 {dimension_numbers = #tpu.dot_dimension_numbers<[1], [0], [0], [1], [0, 0, 1, 1], [], []>} : vector<32x128xf32>, vector<128x128xf32>, vector<32x128xf32> -> vector<32x128xf32>
    %47 = arith.addf %45, %46 : vector<32x128xf32>
    %c96_27 = arith.constant 96 : index
    %c0_28 = arith.constant 0 : index
    %48 = vector.load %arg4[%c96_27, %c0_28] : memref<128x128xf32, #tpu.memory_space<vmem>>, vector<32x128xf32>
    tpu.vector_store %arg4[%c96_27, %c0_28], %47 {strides = array<i32>} : memref<128x128xf32, #tpu.memory_space<vmem>>, vector<32x128xf32>,
    %c0_29 = arith.constant 0 : index
    %c0_30 = arith.constant 0 : index
    %49 = vector.load %arg4[%c0_29, %c0_30] : memref<128x128xf32, #tpu.memory_space<vmem>>, vector<128x128xf32>
    %50 = tpu.transpose %49, [1, 0] : vector<128x128xf32> -> vector<128x128xf32>
    %c0_31 = arith.constant 0 : index
    %c0_32 = arith.constant 0 : index
    %51 = vector.load %arg3[%c0_31, %c0_32] : memref<128x128xf32, #tpu.memory_space<vmem>>, vector<128x128xf32>
    tpu.vector_store %arg3[%c0_31, %c0_32], %50 {strides = array<i32>} : memref<128x128xf32, #tpu.memory_space<vmem>>, vector<128x128xf32>,
    return
  }
  func.func @transform_0(%arg0: i32) -> (i32, i32) {
    %c0_i32 = arith.constant 0 : i32
    %c0_i32_0 = arith.constant 0 : i32
    return %c0_i32, %arg0 : i32, i32
  }
  func.func @transform_1(%arg0: i32) -> (i32, i32, i32) {
    %c0_i32 = arith.constant 0 : i32
    %c0_i32_0 = arith.constant 0 : i32
    %c0_i32_1 = arith.constant 0 : i32
    %c0_i32_2 = arith.constant 0 : i32
    return %c0_i32, %c0_i32_0, %c0_i32_1 : i32, i32, i32
  }
  func.func @transform_2(%arg0: i32) -> (i32, i32) {
    %c0_i32 = arith.constant 0 : i32
    %c0_i32_0 = arith.constant 0 : i32
    return %arg0, %c0_i32 : i32, i32
  }
}

module attributes {stable_mosaic.version = 11 : i64} {
  func.func @_embed_gather_kernel(%arg0: i32, %arg1: memref<4x128xi32, #tpu.memory_space<vmem>>, %arg2: memref<1x32x128xf32, #tpu.memory_space<vmem>>, %arg3: memref<128x128xf32, #tpu.memory_space<vmem>>, %arg4: memref<128x128xf32, #tpu.memory_space<vmem>>) attributes {dimension_semantics = [#tpu.dimension_semantics<parallel>], iteration_bounds = array<i64: 1>, scalar_prefetch = 0 : i64, scratch_operands = 1 : i64, tpu.core_type = #tpu.core_type<tc>, window_params = [{transform_indices = @transform_0, window_bounds = array<i64: 4, 128>}, {pipeline_mode = #tpu.pipeline_mode<synchronous>, transform_indices = @transform_1, window_bounds = array<i64: 1, 32, 128>}, {transform_indices = @transform_2, window_bounds = array<i64: 128, 128>}]} {
    %cst = arith.constant 0.000000e+00 : f32
    %0 = vector.broadcast %cst : f32 to vector<128x128xf32>
    %c0 = arith.constant 0 : index
    %c0_0 = arith.constant 0 : index
    %1 = vector.load %arg4[%c0, %c0_0] : memref<128x128xf32, #tpu.memory_space<vmem>>, vector<128x128xf32>
    tpu.vector_store %arg4[%c0, %c0_0], %0 {strides = array<i32>} : memref<128x128xf32, #tpu.memory_space<vmem>>, vector<128x128xf32>,
    %2 = tpu.iota {dimensions = array<i32: 0>} : vector<128x128xi32>
    %c0_1 = arith.constant 0 : index
    %c0_2 = arith.constant 0 : index
    %c0_3 = arith.constant 0 : index
    %3 = vector.load %arg2[%c0_1, %c0_2, %c0_3] : memref<1x32x128xf32, #tpu.memory_space<vmem>>, vector<1x32x128xf32>
    %4 = vector.shape_cast %3 : vector<1x32x128xf32> to vector<32x128xf32>
    %c0_4 = arith.constant 0 : index
    %c0_5 = arith.constant 0 : index
    %5 = vector.load %arg1[%c0_4, %c0_5] : memref<4x128xi32, #tpu.memory_space<vmem>>, vector<1x128xi32>
    %c0_i32 = arith.constant 0 : i32
    %6 = vector.broadcast %c0_i32 : i32 to vector<1x128xi32>
    %7 = arith.subi %5, %6 : vector<1x128xi32>
    %8 = vector.broadcast %7 : vector<1x128xi32> to vector<128x128xi32>
    %9 = arith.cmpi eq, %2, %8 : vector<128x128xi32>
    %10 = arith.extui %9 : vector<128x128xi1> to vector<128x128xi32>
    %11 = arith.sitofp %10 : vector<128x128xi32> to vector<128x128xf32>
    %c0_6 = arith.constant 0 : index
    %c0_7 = arith.constant 0 : index
    %12 = vector.load %arg4[%c0_6, %c0_7] : memref<128x128xf32, #tpu.memory_space<vmem>>, vector<32x128xf32>
    %cst_8 = arith.constant dense<0.000000e+00> : vector<32x128xf32>
    %13 = tpu.matmul %4, %11, %cst_8 {dimension_numbers = #tpu.dot_dimension_numbers<[1], [0], [0], [1], [0, 0, 1, 1], [], []>} : vector<32x128xf32>, vector<128x128xf32>, vector<32x128xf32> -> vector<32x128xf32>
    %14 = arith.addf %12, %13 : vector<32x128xf32>
    %c0_9 = arith.constant 0 : index
    %c0_10 = arith.constant 0 : index
    %15 = vector.load %arg4[%c0_9, %c0_10] : memref<128x128xf32, #tpu.memory_space<vmem>>, vector<32x128xf32>
    tpu.vector_store %arg4[%c0_9, %c0_10], %14 {strides = array<i32>} : memref<128x128xf32, #tpu.memory_space<vmem>>, vector<32x128xf32>,
    %c1 = arith.constant 1 : index
    %c0_11 = arith.constant 0 : index
    %16 = vector.load %arg1[%c1, %c0_11] : memref<4x128xi32, #tpu.memory_space<vmem>>, vector<1x128xi32>
    %c0_i32_12 = arith.constant 0 : i32
    %17 = vector.broadcast %c0_i32_12 : i32 to vector<1x128xi32>
    %18 = arith.subi %16, %17 : vector<1x128xi32>
    %19 = vector.broadcast %18 : vector<1x128xi32> to vector<128x128xi32>
    %20 = arith.cmpi eq, %2, %19 : vector<128x128xi32>
    %21 = arith.extui %20 : vector<128x128xi1> to vector<128x128xi32>
    %22 = arith.sitofp %21 : vector<128x128xi32> to vector<128x128xf32>
    %c32 = arith.constant 32 : index
    %c0_13 = arith.constant 0 : index
    %23 = vector.load %arg4[%c32, %c0_13] : memref<128x128xf32, #tpu.memory_space<vmem>>, vector<32x128xf32>
    %cst_14 = arith.constant dense<0.000000e+00> : vector<32x128xf32>
    %24 = tpu.matmul %4, %22, %cst_14 {dimension_numbers = #tpu.dot_dimension_numbers<[1], [0], [0], [1], [0, 0, 1, 1], [], []>} : vector<32x128xf32>, vector<128x128xf32>, vector<32x128xf32> -> vector<32x128xf32>
    %25 = arith.addf %23, %24 : vector<32x128xf32>
    %c32_15 = arith.constant 32 : index
    %c0_16 = arith.constant 0 : index
    %26 = vector.load %arg4[%c32_15, %c0_16] : memref<128x128xf32, #tpu.memory_space<vmem>>, vector<32x128xf32>
    tpu.vector_store %arg4[%c32_15, %c0_16], %25 {strides = array<i32>} : memref<128x128xf32, #tpu.memory_space<vmem>>, vector<32x128xf32>,
    %c2 = arith.constant 2 : index
    %c0_17 = arith.constant 0 : index
    %27 = vector.load %arg1[%c2, %c0_17] : memref<4x128xi32, #tpu.memory_space<vmem>>, vector<1x128xi32>
    %c0_i32_18 = arith.constant 0 : i32
    %28 = vector.broadcast %c0_i32_18 : i32 to vector<1x128xi32>
    %29 = arith.subi %27, %28 : vector<1x128xi32>
    %30 = vector.broadcast %29 : vector<1x128xi32> to vector<128x128xi32>
    %31 = arith.cmpi eq, %2, %30 : vector<128x128xi32>
    %32 = arith.extui %31 : vector<128x128xi1> to vector<128x128xi32>
    %33 = arith.sitofp %32 : vector<128x128xi32> to vector<128x128xf32>
    %c64 = arith.constant 64 : index
    %c0_19 = arith.constant 0 : index
    %34 = vector.load %arg4[%c64, %c0_19] : memref<128x128xf32, #tpu.memory_space<vmem>>, vector<32x128xf32>
    %cst_20 = arith.constant dense<0.000000e+00> : vector<32x128xf32>
    %35 = tpu.matmul %4, %33, %cst_20 {dimension_numbers = #tpu.dot_dimension_numbers<[1], [0], [0], [1], [0, 0, 1, 1], [], []>} : vector<32x128xf32>, vector<128x128xf32>, vector<32x128xf32> -> vector<32x128xf32>
    %36 = arith.addf %34, %35 : vector<32x128xf32>
    %c64_21 = arith.constant 64 : index
    %c0_22 = arith.constant 0 : index
    %37 = vector.load %arg4[%c64_21, %c0_22] : memref<128x128xf32, #tpu.memory_space<vmem>>, vector<32x128xf32>
    tpu.vector_store %arg4[%c64_21, %c0_22], %36 {strides = array<i32>} : memref<128x128xf32, #tpu.memory_space<vmem>>, vector<32x128xf32>,
    %c3 = arith.constant 3 : index
    %c0_23 = arith.constant 0 : index
    %38 = vector.load %arg1[%c3, %c0_23] : memref<4x128xi32, #tpu.memory_space<vmem>>, vector<1x128xi32>
    %c0_i32_24 = arith.constant 0 : i32
    %39 = vector.broadcast %c0_i32_24 : i32 to vector<1x128xi32>
    %40 = arith.subi %38, %39 : vector<1x128xi32>
    %41 = vector.broadcast %40 : vector<1x128xi32> to vector<128x128xi32>
    %42 = arith.cmpi eq, %2, %41 : vector<128x128xi32>
    %43 = arith.extui %42 : vector<128x128xi1> to vector<128x128xi32>
    %44 = arith.sitofp %43 : vector<128x128xi32> to vector<128x128xf32>
    %c96 = arith.constant 96 : index
    %c0_25 = arith.constant 0 : index
    %45 = vector.load %arg4[%c96, %c0_25] : memref<128x128xf32, #tpu.memory_space<vmem>>, vector<32x128xf32>
    %cst_26 = arith.constant dense<0.000000e+00> : vector<32x128xf32>
    %46 = tpu.matmul %4, %44, %cst_26 {dimension_numbers = #tpu.dot_dimension_numbers<[1], [0], [0], [1], [0, 0, 1, 1], [], []>} : vector<32x128xf32>, vector<128x128xf32>, vector<32x128xf32> -> vector<32x128xf32>
    %47 = arith.addf %45, %46 : vector<32x128xf32>
    %c96_27 = arith.constant 96 : index
    %c0_28 = arith.constant 0 : index
    %48 = vector.load %arg4[%c96_27, %c0_28] : memref<128x128xf32, #tpu.memory_space<vmem>>, vector<32x128xf32>
    tpu.vector_store %arg4[%c96_27, %c0_28], %47 {strides = array<i32>} : memref<128x128xf32, #tpu.memory_space<vmem>>, vector<32x128xf32>,
    %c0_29 = arith.constant 0 : index
    %c0_30 = arith.constant 0 : index
    %49 = vector.load %arg4[%c0_29, %c0_30] : memref<128x128xf32, #tpu.memory_space<vmem>>, vector<128x128xf32>
    %50 = tpu.transpose %49, [1, 0] : vector<128x128xf32> -> vector<128x128xf32>
    %c0_31 = arith.constant 0 : index
    %c0_32 = arith.constant 0 : index
    %51 = vector.load %arg3[%c0_31, %c0_32] : memref<128x128xf32, #tpu.memory_space<vmem>>, vector<128x128xf32>
    tpu.vector_store %arg3[%c0_31, %c0_32], %50 {strides = array<i32>} : memref<128x128xf32, #tpu.memory_space<vmem>>, vector<128x128xf32>,
    return
  }
  func.func @transform_0(%arg0: i32) -> (i32, i32) {
    %c0_i32 = arith.constant 0 : i32
    %c0_i32_0 = arith.constant 0 : i32
    return %c0_i32, %arg0 : i32, i32
  }
  func.func @transform_1(%arg0: i32) -> (i32, i32, i32) {
    %c0_i32 = arith.constant 0 : i32
    %c0_i32_0 = arith.constant 0 : i32
    %c0_i32_1 = arith.constant 0 : i32
    %c0_i32_2 = arith.constant 0 : i32
    return %c0_i32, %c0_i32_0, %c0_i32_1 : i32, i32, i32
  }
  func.func @transform_2(%arg0: i32) -> (i32, i32) {
    %c0_i32 = arith.constant 0 : i32
    %c0_i32_0 = arith.constant 0 : i32
    return %arg0, %c0_i32 : i32, i32
  }
}

</mosaic_0001>

<llo_original>
// kernel: tpu_custom_call.1
$region0: #{tpu_custom_call.1}
  #allocation0 [shape = 'u32[]', space=smem, size = 0x4, offset = 0x4, fixed_abs, tag = 'smem constant byte address 0x4 - core index']
  #allocation1 [shape = 'u32[144,128]{1,0:T(1,128)}', space=vmem, size = 0x12000, scoped, tag = 'internal scratch']
  #allocation2 [shape = 'f32[128,128]{1,0:T(8,128)}', space=vmem, size = 0x10000, scoped, tag = 'scratch operand']
  %s0 = inlined_call_operand.hbm [shape: s32[4,128], index: 0, kind: input, shape index: {}]
  %s1 = inlined_call_operand.hbm [shape: f32[1,32,128], index: 1, kind: input, shape index: {}]
  %s2 = inlined_call_operand.hbm [shape: f32[128,128], index: 2, kind: output, shape index: {}]
  %s3 = sld [smem:[#allocation0]]
  $region26: #{tpu_custom_call.1} parent=0
    _
  %s5 = ssub.s32 1, %s3
  %s6 = scalar_select 0, %s5, %s3
  $region1: #{tpu_custom_call.1} parent=0
    #allocation3 [shape = 'u8[2048]{0}', space=vmem, size = 0x800, scoped, tag = 'input window, operand 0, single buffered']
    #allocation4 [shape = 's32[1]{0}', space=sflag, size = 0x4, scoped, tag = 'scoped memory for tpu_custom_call.1']
    #allocation5 [shape = 's32[1]{0}', space=sflag, size = 0x4, scoped, tag = 'scoped memory for tpu_custom_call.1']
    #allocation6 [shape = 'u8[16384]{0}', space=vmem, size = 0x4000, scoped, tag = 'input window, operand 1, single buffered']
    #allocation7 [shape = 's32[1]{0}', space=sflag, size = 0x4, scoped, tag = 'scoped memory for tpu_custom_call.1']
    #allocation8 [shape = 'u8[65536]{0}', space=vmem, size = 0x10000, scoped, tag = 'output window, operand 0, single buffered']
    %7 = vsyncpa [#allocation4], 0
    %8 = vsyncpa [#allocation7], 0
    %9 = vsyncpa [#allocation5], 0
    // Predicated region
    $region2: #{tpu_custom_call.1} parent=1 // pred_check
      _
    $region3: #{tpu_custom_call.1} parent=1 // pred_check_branch
      %11 = sbr.rel (0) target = $region5
    $region4: #{tpu_custom_call.1} parent=1 // pred_region
      %s13 = ssub.s32 64, 64
      %14 = vsyncadd [#allocation4], %s13
      %s16 = sshll.u32 [#allocation3], 4
      %s17 = int_to_ptr.vmem [resolvable:$true] %s16
      %19 = dma.hbm_to_vmem [thread:$0]  %s0, 64, %s17, [#allocation4]
    $region5: #{tpu_custom_call.1} parent=1 // pred_fallthru
      _
    // Predicated region
    $region6: #{tpu_custom_call.1} parent=1 // pred_check
      _
    $region7: #{tpu_custom_call.1} parent=1 // pred_check_branch
      %21 = sbr.rel (0) target = $region9
    $region8: #{tpu_custom_call.1} parent=1 // pred_region
      %s23 = ssub.s32 512, 512
      %24 = vsyncadd [#allocation7], %s23
      %s25 = sshll.u32 [#allocation6], 4
      %s26 = int_to_ptr.vmem [resolvable:$true] %s25
      %31 = dma.hbm_to_vmem [thread:$0]  %s1, 512, %s26, [#allocation7], 128, 128, 8
    $region9: #{tpu_custom_call.1} parent=1 // pred_fallthru
      _
    // Predicated region
    $region10: #{tpu_custom_call.1} parent=1 // pred_check
      _
    $region11: #{tpu_custom_call.1} parent=1 // pred_check_branch
      %33 = sbr.rel (0) target = $region13
    $region12: #{tpu_custom_call.1} parent=1 // pred_region
      %34 = dma.done [#allocation4], 64
    $region13: #{tpu_custom_call.1} parent=1 // pred_fallthru
      _
    // Predicated region
    $region14: #{tpu_custom_call.1} parent=1 // pred_check
      _
    $region15: #{tpu_custom_call.1} parent=1 // pred_check_branch
      %36 = sbr.rel (0) target = $region17
    $region16: #{tpu_custom_call.1} parent=1 // pred_region
      %37 = dma.done [#allocation7], 512
    $region17: #{tpu_custom_call.1} parent=1 // pred_fallthru
      _
    %38 = vst [vmem:[#allocation2] sm:$0xff] 0.0
    %39 = vst [vmem:[#allocation2 + $0x8] sm:$0xff] 0.0
    %40 = vst [vmem:[#allocation2 + $0x10] sm:$0xff] 0.0
    %41 = vst [vmem:[#allocation2 + $0x18] sm:$0xff] 0.0
    %42 = vst [vmem:[#allocation2 + $0x20] sm:$0xff] 0.0
    %43 = vst [vmem:[#allocation2 + $0x28] sm:$0xff] 0.0
    %44 = vst [vmem:[#allocation2 + $0x30] sm:$0xff] 0.0
    %45 = vst [vmem:[#allocation2 + $0x38] sm:$0xff] 0.0
    %46 = vst [vmem:[#allocation2 + $0x40] sm:$0xff] 0.0
    %47 = vst [vmem:[#allocation2 + $0x48] sm:$0xff] 0.0
    %48 = vst [vmem:[#allocation2 + $0x50] sm:$0xff] 0.0
    %49 = vst [vmem:[#allocation2 + $0x58] sm:$0xff] 0.0
    %50 = vst [vmem:[#allocation2 + $0x60] sm:$0xff] 0.0
    %51 = vst [vmem:[#allocation2 + $0x68] sm:$0xff] 0.0
    %52 = vst [vmem:[#allocation2 + $0x70] sm:$0xff] 0.0
    %53 = vst [vmem:[#allocation2 + $0x78] sm:$0xff] 0.0
    %v54 = vlaneseq
    %v55 = vshrl.u32 %v54, 7
    %v56 = vadd.s32 %v55, 8
    %v57 = vadd.s32 %v55, 16
    %v58 = vadd.s32 %v55, 24
    %v59 = vadd.s32 %v55, 32
    %v60 = vadd.s32 %v55, 40
    %v61 = vadd.s32 %v55, 48
    %v62 = vadd.s32 %v55, 56
    %v63 = vadd.s32 %v55, 64
    %v64 = vadd.s32 %v55, 72
    %v65 = vadd.s32 %v55, 80
    %v66 = vadd.s32 %v55, 88
    %v67 = vadd.s32 %v55, 96
    %v68 = vadd.s32 %v55, 104
    %v69 = vadd.s32 %v55, 112
    %v70 = vadd.s32 %v55, 120
    %v71 = vld [vmem:[#allocation6] sm:$0xff]
    %v72 = vld [vmem:[#allocation6 + $0x8] sm:$0xff]
    %v73 = vld [vmem:[#allocation6 + $0x10] sm:$0xff]
    %v74 = vld [vmem:[#allocation6 + $0x18] sm:$0xff]
    %v75 = vld [vmem:[#allocation3] sm:$0x1]
    %v76 = vlaneseq
    %v77 = vshrl.u32 %v76, 7
    %v78 = vsub.s32 0, %v77
    %v79 = vrot.slane %v75, %v78
    %vm80 = vcmp.eq.s32.totalorder %v55, %v79
    %vm81 = vcmp.eq.s32.totalorder %v56, %v79
    %vm82 = vcmp.eq.s32.totalorder %v57, %v79
    %vm83 = vcmp.eq.s32.totalorder %v58, %v79
    %vm84 = vcmp.eq.s32.totalorder %v59, %v79
    %vm85 = vcmp.eq.s32.totalorder %v60, %v79
    %vm86 = vcmp.eq.s32.totalorder %v61, %v79
    %vm87 = vcmp.eq.s32.totalorder %v62, %v79
    %vm88 = vcmp.eq.s32.totalorder %v63, %v79
    %vm89 = vcmp.eq.s32.totalorder %v64, %v79
    %vm90 = vcmp.eq.s32.totalorder %v65, %v79
    %vm91 = vcmp.eq.s32.totalorder %v66, %v79
    %vm92 = vcmp.eq.s32.totalorder %v67, %v79
    %vm93 = vcmp.eq.s32.totalorder %v68, %v79
    %vm94 = vcmp.eq.s32.totalorder %v69, %v79
    %vm95 = vcmp.eq.s32.totalorder %v70, %v79
    %v96 = vsel %vm80, 1, 0
    %v97 = vsel %vm81, 1, 0
    %v98 = vsel %vm82, 1, 0
    %v99 = vsel %vm83, 1, 0
    %v100 = vsel %vm84, 1, 0
    %v101 = vsel %vm85, 1, 0
    %v102 = vsel %vm86, 1, 0
    %v103 = vsel %vm87, 1, 0
    %v104 = vsel %vm88, 1, 0
    %v105 = vsel %vm89, 1, 0
    %v106 = vsel %vm90, 1, 0
    %v107 = vsel %vm91, 1, 0
    %v108 = vsel %vm92, 1, 0
    %v109 = vsel %vm93, 1, 0
    %v110 = vsel %vm94, 1, 0
    %v111 = vsel %vm95, 1, 0
    %v112 = vcvt.s32.f32 %v96
    %v113 = vcvt.s32.f32 %v97
    %v114 = vcvt.s32.f32 %v98
    %v115 = vcvt.s32.f32 %v99
    %v116 = vcvt.s32.f32 %v100
    %v117 = vcvt.s32.f32 %v101
    %v118 = vcvt.s32.f32 %v102
    %v119 = vcvt.s32.f32 %v103
    %v120 = vcvt.s32.f32 %v104
    %v121 = vcvt.s32.f32 %v105
    %v122 = vcvt.s32.f32 %v106
    %v123 = vcvt.s32.f32 %v107
    %v124 = vcvt.s32.f32 %v108
    %v125 = vcvt.s32.f32 %v109
    %v126 = vcvt.s32.f32 %v110
    %v127 = vcvt.s32.f32 %v111
    %v128 = vld [vmem:[#allocation2] sm:$0xff]
    %v129 = vld [vmem:[#allocation2 + $0x8] sm:$0xff]
    %v130 = vld [vmem:[#allocation2 + $0x10] sm:$0xff]
    %v131 = vld [vmem:[#allocation2 + $0x18] sm:$0xff]
    %132 = vmatprep.subr.mxu0 0.0
    %133 = vmatpush1.msra.mxu0 %v112
    %134 = vmatprep.subr.mxu0 0.0
    %135 = vmatpush1.msra.mxu0 %v113
    %136 = vmatprep.subr.mxu0 0.0
    %137 = vmatpush1.msra.mxu0 %v114
    %138 = vmatprep.subr.mxu0 0.0
    %139 = vmatpush1.msra.mxu0 %v115
    %140 = vmatprep.subr.mxu0 0.0
    %141 = vmatpush1.msra.mxu0 %v116
    %142 = vmatprep.subr.mxu0 0.0
    %143 = vmatpush1.msra.mxu0 %v117
    %144 = vmatprep.subr.mxu0 0.0
    %145 = vmatpush1.msra.mxu0 %v118
    %146 = vmatprep.subr.mxu0 0.0
    %147 = vmatpush1.msra.mxu0 %v119
    %148 = vmatprep.subr.mxu0 0.0
    %149 = vmatpush1.msra.mxu0 %v120
    %150 = vmatprep.subr.mxu0 0.0
    %151 = vmatpush1.msra.mxu0 %v121
    %152 = vmatprep.subr.mxu0 0.0
    %153 = vmatpush1.msra.mxu0 %v122
    %154 = vmatprep.subr.mxu0 0.0
    %155 = vmatpush1.msra.mxu0 %v123
    %156 = vmatprep.subr.mxu0 0.0
    %157 = vmatpush1.msra.mxu0 %v124
    %158 = vmatprep.subr.mxu0 0.0
    %159 = vmatpush1.msra.mxu0 %v125
    %160 = vmatprep.subr.mxu0 0.0
    %161 = vmatpush1.msra.mxu0 %v126
    %162 = vmatprep.subr.mxu0 0.0
    %163 = vmatpush1.msra.mxu0 %v127
    %164 = vmatprep.subr.mxu0 0.0
    %165 = vmatpush1.msra.mxu0 0.0
    %166 = vmatprep.subr.mxu0 0.0
    %167 = vmatpush1.msra.mxu0 0.0
    %168 = vmatprep.subr.mxu0 0.0
    %169 = vmatpush1.msra.mxu0 0.0
    %170 = vmatprep.subr.mxu0 0.0
    %171 = vmatpush1.msra.mxu0 0.0
    %172 = vmatprep.subr.mxu0 0.0
    %173 = vmatpush1.msra.mxu0 0.0
    %174 = vmatprep.subr.mxu0 0.0
    %175 = vmatpush1.msra.mxu0 0.0
    %176 = vmatprep.subr.mxu0 0.0
    %177 = vmatpush1.msra.mxu0 0.0
    %178 = vmatprep.subr.mxu0 0.0
    %179 = vmatpush1.msra.mxu0 0.0
    %180 = vmatprep.subr.mxu0 0.0
    %181 = vmatpush1.msra.mxu0 0.0
    %182 = vmatprep.subr.mxu0 0.0
    %183 = vmatpush1.msra.mxu0 0.0
    %184 = vmatprep.subr.mxu0 0.0
    %185 = vmatpush1.msra.mxu0 0.0
    %186 = vmatprep.subr.mxu0 0.0
    %187 = vmatpush1.msra.mxu0 0.0
    %188 = vmatprep.subr.mxu0 0.0
    %189 = vmatpush1.msra.mxu0 0.0
    %190 = vmatprep.subr.mxu0 0.0
    %191 = vmatpush1.msra.mxu0 0.0
    %192 = vmatprep.subr.mxu0 0.0
    %193 = vmatpush1.msra.mxu0 0.0
    %194 = vmatprep.subr.mxu0 0.0
    %195 = vmatpush1.msra.mxu0 0.0
    %196 = vmatprep.mubr.f32.mxu0 0.0
    %197 = vmatmul.mubr.f32.gmra.mrb[0].mxu0 %v71
    %v198 = vpop.f32.mrb[0].mxu0
    %v199 = vadd.f32 0.0, %v198
    %v200 = vpop.f32.mrb[0].mxu0
    %201 = vmatprep.mubr.f32.mxu0 0.0
    %202 = vmatmul.mubr.f32.gmra.mrb[0].mxu0 %v72
    %v203 = vpop.f32.mrb[0].mxu0
    %v204 = vadd.f32 0.0, %v203
    %v205 = vpop.f32.mrb[0].mxu0
    %206 = vmatprep.mubr.f32.mxu0 0.0
    %207 = vmatmul.mubr.f32.gmra.mrb[0].mxu0 %v73
    %v208 = vpop.f32.mrb[0].mxu0
    %v209 = vadd.f32 0.0, %v208
    %v210 = vpop.f32.mrb[0].mxu0
    %211 = vmatprep.mubr.f32.mxu0 0.0
    %212 = vmatmul.mubr.f32.gmra.mrb[0].mxu0 %v74
    %v213 = vpop.f32.mrb[0].mxu0
    %v214 = vadd.f32 0.0, %v213
    %v215 = vpop.f32.mrb[0].mxu0
    %216 = vdwg.mxu0
    %v217 = vadd.f32 %v128, %v199
    %v218 = vadd.f32 %v129, %v204
    %v219 = vadd.f32 %v130, %v209
    %v220 = vadd.f32 %v131, %v214
    %221 = vst [vmem:[#allocation2] sm:$0xff] %v217
    %222 = vst [vmem:[#allocation2 + $0x8] sm:$0xff] %v218
    %223 = vst [vmem:[#allocation2 + $0x10] sm:$0xff] %v219
    %224 = vst [vmem:[#allocation2 + $0x18] sm:$0xff] %v220
    %v225 = vld [vmem:[#allocation3 + $0x1] sm:$0x1]
    %v226 = vlaneseq
    %v227 = vshrl.u32 %v226, 7
    %v228 = vsub.s32 0, %v227
    %v229 = vrot.slane %v225, %v228
    %vm230 = vcmp.eq.s32.totalorder %v55, %v229
    %vm231 = vcmp.eq.s32.totalorder %v56, %v229
    %vm232 = vcmp.eq.s32.totalorder %v57, %v229
    %vm233 = vcmp.eq.s32.totalorder %v58, %v229
    %vm234 = vcmp.eq.s32.totalorder %v59, %v229
    %vm235 = vcmp.eq.s32.totalorder %v60, %v229
    %vm236 = vcmp.eq.s32.totalorder %v61, %v229
    %vm237 = vcmp.eq.s32.totalorder %v62, %v229
    %vm238 = vcmp.eq.s32.totalorder %v63, %v229
    %vm239 = vcmp.eq.s32.totalorder %v64, %v229
    %vm240 = vcmp.eq.s32.totalorder %v65, %v229
    %vm241 = vcmp.eq.s32.totalorder %v66, %v229
    %vm242 = vcmp.eq.s32.totalorder %v67, %v229
    %vm243 = vcmp.eq.s32.totalorder %v68, %v229
    %vm244 = vcmp.eq.s32.totalorder %v69, %v229
    %vm245 = vcmp.eq.s32.totalorder %v70, %v229
    %v246 = vsel %vm230, 1, 0
    %v247 = vsel %vm231, 1, 0
    %v248 = vsel %vm232, 1, 0
    %v249 = vsel %vm233, 1, 0
    %v250 = vsel %vm234, 1, 0
    %v251 = vsel %vm235, 1, 0
    %v252 = vsel %vm236, 1, 0
    %v253 = vsel %vm237, 1, 0
    %v254 = vsel %vm238, 1, 0
    %v255 = vsel %vm239, 1, 0
    %v256 = vsel %vm240, 1, 0
    %v257 = vsel %vm241, 1, 0
    %v258 = vsel %vm242, 1, 0
    %v259 = vsel %vm243, 1, 0
    %v260 = vsel %vm244, 1, 0
    %v261 = vsel %vm245, 1, 0
    %v262 = vcvt.s32.f32 %v246
    %v263 = vcvt.s32.f32 %v247
    %v264 = vcvt.s32.f32 %v248
    %v265 = vcvt.s32.f32 %v249
    %v266 = vcvt.s32.f32 %v250
    %v267 = vcvt.s32.f32 %v251
    %v268 = vcvt.s32.f32 %v252
    %v269 = vcvt.s32.f32 %v253
    %v270 = vcvt.s32.f32 %v254
    %v271 = vcvt.s32.f32 %v255
    %v272 = vcvt.s32.f32 %v256
    %v273 = vcvt.s32.f32 %v257
    %v274 = vcvt.s32.f32 %v258
    %v275 = vcvt.s32.f32 %v259
    %v276 = vcvt.s32.f32 %v260
    %v277 = vcvt.s32.f32 %v261
    %v278 = vld [vmem:[#allocation2 + $0x20] sm:$0xff]
    %v279 = vld [vmem:[#allocation2 + $0x28] sm:$0xff]
    %v280 = vld [vmem:[#allocation2 + $0x30] sm:$0xff]
    %v281 = vld [vmem:[#allocation2 + $0x38] sm:$0xff]
    %282 = vmatprep.subr.mxu0 0.0
    %283 = vmatpush1.msra.mxu0 %v262
    %284 = vmatprep.subr.mxu0 0.0
    %285 = vmatpush1.msra.mxu0 %v263
    %286 = vmatprep.subr.mxu0 0.0
    %287 = vmatpush1.msra.mxu0 %v264
    %288 = vmatprep.subr.mxu0 0.0
    %289 = vmatpush1.msra.mxu0 %v265
    %290 = vmatprep.subr.mxu0 0.0
    %291 = vmatpush1.msra.mxu0 %v266
    %292 = vmatprep.subr.mxu0 0.0
    %293 = vmatpush1.msra.mxu0 %v267
    %294 = vmatprep.subr.mxu0 0.0
    %295 = vmatpush1.msra.mxu0 %v268
    %296 = vmatprep.subr.mxu0 0.0
    %297 = vmatpush1.msra.mxu0 %v269
    %298 = vmatprep.subr.mxu0 0.0
    %299 = vmatpush1.msra.mxu0 %v270
    %300 = vmatprep.subr.mxu0 0.0
    %301 = vmatpush1.msra.mxu0 %v271
    %302 = vmatprep.subr.mxu0 0.0
    %303 = vmatpush1.msra.mxu0 %v272
    %304 = vmatprep.subr.mxu0 0.0
    %305 = vmatpush1.msra.mxu0 %v273
    %306 = vmatprep.subr.mxu0 0.0
    %307 = vmatpush1.msra.mxu0 %v274
    %308 = vmatprep.subr.mxu0 0.0
    %309 = vmatpush1.msra.mxu0 %v275
    %310 = vmatprep.subr.mxu0 0.0
    %311 = vmatpush1.msra.mxu0 %v276
    %312 = vmatprep.subr.mxu0 0.0
    %313 = vmatpush1.msra.mxu0 %v277
    %314 = vmatprep.subr.mxu0 0.0
    %315 = vmatpush1.msra.mxu0 0.0
    %316 = vmatprep.subr.mxu0 0.0
    %317 = vmatpush1.msra.mxu0 0.0
    %318 = vmatprep.subr.mxu0 0.0
    %319 = vmatpush1.msra.mxu0 0.0
    %320 = vmatprep.subr.mxu0 0.0
    %321 = vmatpush1.msra.mxu0 0.0
    %322 = vmatprep.subr.mxu0 0.0
    %323 = vmatpush1.msra.mxu0 0.0
    %324 = vmatprep.subr.mxu0 0.0
    %325 = vmatpush1.msra.mxu0 0.0
    %326 = vmatprep.subr.mxu0 0.0
    %327 = vmatpush1.msra.mxu0 0.0
    %328 = vmatprep.subr.mxu0 0.0
    %329 = vmatpush1.msra.mxu0 0.0
    %330 = vmatprep.subr.mxu0 0.0
    %331 = vmatpush1.msra.mxu0 0.0
    %332 = vmatprep.subr.mxu0 0.0
    %333 = vmatpush1.msra.mxu0 0.0
    %334 = vmatprep.subr.mxu0 0.0
    %335 = vmatpush1.msra.mxu0 0.0
    %336 = vmatprep.subr.mxu0 0.0
    %337 = vmatpush1.msra.mxu0 0.0
    %338 = vmatprep.subr.mxu0 0.0
    %339 = vmatpush1.msra.mxu0 0.0
    %340 = vmatprep.subr.mxu0 0.0
    %341 = vmatpush1.msra.mxu0 0.0
    %342 = vmatprep.subr.mxu0 0.0
    %343 = vmatpush1.msra.mxu0 0.0
    %344 = vmatprep.subr.mxu0 0.0
    %345 = vmatpush1.msra.mxu0 0.0
    %346 = vmatprep.mubr.f32.mxu0 0.0
    %347 = vmatmul.mubr.f32.gmra.mrb[0].mxu0 %v71
    %v348 = vpop.f32.mrb[0].mxu0
    %v349 = vadd.f32 0.0, %v348
    %v350 = vpop.f32.mrb[0].mxu0
    %351 = vmatprep.mubr.f32.mxu0 0.0
    %352 = vmatmul.mubr.f32.gmra.mrb[0].mxu0 %v72
    %v353 = vpop.f32.mrb[0].mxu0
    %v354 = vadd.f32 0.0, %v353
    %v355 = vpop.f32.mrb[0].mxu0
    %356 = vmatprep.mubr.f32.mxu0 0.0
    %357 = vmatmul.mubr.f32.gmra.mrb[0].mxu0 %v73
    %v358 = vpop.f32.mrb[0].mxu0
    %v359 = vadd.f32 0.0, %v358
    %v360 = vpop.f32.mrb[0].mxu0
    %361 = vmatprep.mubr.f32.mxu0 0.0
    %362 = vmatmul.mubr.f32.gmra.mrb[0].mxu0 %v74
    %v363 = vpop.f32.mrb[0].mxu0
    %v364 = vadd.f32 0.0, %v363
    %v365 = vpop.f32.mrb[0].mxu0
    %366 = vdwg.mxu0
    %v367 = vadd.f32 %v278, %v349
    %v368 = vadd.f32 %v279, %v354
    %v369 = vadd.f32 %v280, %v359
    %v370 = vadd.f32 %v281, %v364
    %371 = vst [vmem:[#allocation2 + $0x20] sm:$0xff] %v367
    %372 = vst [vmem:[#allocation2 + $0x28] sm:$0xff] %v368
    %373 = vst [vmem:[#allocation2 + $0x30] sm:$0xff] %v369
    %374 = vst [vmem:[#allocation2 + $0x38] sm:$0xff] %v370
    %v375 = vld [vmem:[#allocation3 + $0x2] sm:$0x1]
    %v376 = vlaneseq
    %v377 = vshrl.u32 %v376, 7
    %v378 = vsub.s32 0, %v377
    %v379 = vrot.slane %v375, %v378
    %vm380 = vcmp.eq.s32.totalorder %v55, %v379
    %vm381 = vcmp.eq.s32.totalorder %v56, %v379
    %vm382 = vcmp.eq.s32.totalorder %v57, %v379
    %vm383 = vcmp.eq.s32.totalorder %v58, %v379
    %vm384 = vcmp.eq.s32.totalorder %v59, %v379
    %vm385 = vcmp.eq.s32.totalorder %v60, %v379
    %vm386 = vcmp.eq.s32.totalorder %v61, %v379
    %vm387 = vcmp.eq.s32.totalorder %v62, %v379
    %vm388 = vcmp.eq.s32.totalorder %v63, %v379
    %vm389 = vcmp.eq.s32.totalorder %v64, %v379
    %vm390 = vcmp.eq.s32.totalorder %v65, %v379
    %vm391 = vcmp.eq.s32.totalorder %v66, %v379
    %vm392 = vcmp.eq.s32.totalorder %v67, %v379
    %vm393 = vcmp.eq.s32.totalorder %v68, %v379
    %vm394 = vcmp.eq.s32.totalorder %v69, %v379
    %vm395 = vcmp.eq.s32.totalorder %v70, %v379
    %v396 = vsel %vm380, 1, 0
    %v397 = vsel %vm381, 1, 0
    %v398 = vsel %vm382, 1, 0
    %v399 = vsel %vm383, 1, 0
    %v400 = vsel %vm384, 1, 0
    %v401 = vsel %vm385, 1, 0
    %v402 = vsel %vm386, 1, 0
    %v403 = vsel %vm387, 1, 0
    %v404 = vsel %vm388, 1, 0
    %v405 = vsel %vm389, 1, 0
    %v406 = vsel %vm390, 1, 0
    %v407 = vsel %vm391, 1, 0
    %v408 = vsel %vm392, 1, 0
    %v409 = vsel %vm393, 1, 0
    %v410 = vsel %vm394, 1, 0
    %v411 = vsel %vm395, 1, 0
    %v412 = vcvt.s32.f32 %v396
    %v413 = vcvt.s32.f32 %v397
    %v414 = vcvt.s32.f32 %v398
    %v415 = vcvt.s32.f32 %v399
    %v416 = vcvt.s32.f32 %v400
    %v417 = vcvt.s32.f32 %v401
    %v418 = vcvt.s32.f32 %v402
    %v419 = vcvt.s32.f32 %v403
    %v420 = vcvt.s32.f32 %v404
    %v421 = vcvt.s32.f32 %v405
    %v422 = vcvt.s32.f32 %v406
    %v423 = vcvt.s32.f32 %v407
    %v424 = vcvt.s32.f32 %v408
    %v425 = vcvt.s32.f32 %v409
    %v426 = vcvt.s32.f32 %v410
    %v427 = vcvt.s32.f32 %v411
    %v428 = vld [vmem:[#allocation2 + $0x40] sm:$0xff]
    %v429 = vld [vmem:[#allocation2 + $0x48] sm:$0xff]
    %v430 = vld [vmem:[#allocation2 + $0x50] sm:$0xff]
    %v431 = vld [vmem:[#allocation2 + $0x58] sm:$0xff]
    %432 = vmatprep.subr.mxu0 0.0
    %433 = vmatpush1.msra.mxu0 %v412
    %434 = vmatprep.subr.mxu0 0.0
    %435 = vmatpush1.msra.mxu0 %v413
    %436 = vmatprep.subr.mxu0 0.0
    %437 = vmatpush1.msra.mxu0 %v414
    %438 = vmatprep.subr.mxu0 0.0
    %439 = vmatpush1.msra.mxu0 %v415
    %440 = vmatprep.subr.mxu0 0.0
    %441 = vmatpush1.msra.mxu0 %v416
    %442 = vmatprep.subr.mxu0 0.0
    %443 = vmatpush1.msra.mxu0 %v417
    %444 = vmatprep.subr.mxu0 0.0
    %445 = vmatpush1.msra.mxu0 %v418
    %446 = vmatprep.subr.mxu0 0.0
    %447 = vmatpush1.msra.mxu0 %v419
    %448 = vmatprep.subr.mxu0 0.0
    %449 = vmatpush1.msra.mxu0 %v420
    %450 = vmatprep.subr.mxu0 0.0
    %451 = vmatpush1.msra.mxu0 %v421
    %452 = vmatprep.subr.mxu0 0.0
    %453 = vmatpush1.msra.mxu0 %v422
    %454 = vmatprep.subr.mxu0 0.0
    %455 = vmatpush1.msra.mxu0 %v423
    %456 = vmatprep.subr.mxu0 0.0
    %457 = vmatpush1.msra.mxu0 %v424
    %458 = vmatprep.subr.mxu0 0.0
    %459 = vmatpush1.msra.mxu0 %v425
    %460 = vmatprep.subr.mxu0 0.0
    %461 = vmatpush1.msra.mxu0 %v426
    %462 = vmatprep.subr.mxu0 0.0
    %463 = vmatpush1.msra.mxu0 %v427
    %464 = vmatprep.subr.mxu0 0.0
    %465 = vmatpush1.msra.mxu0 0.0
    %466 = vmatprep.subr.mxu0 0.0
    %467 = vmatpush1.msra.mxu0 0.0
    %468 = vmatprep.subr.mxu0 0.0
    %469 = vmatpush1.msra.mxu0 0.0
    %470 = vmatprep.subr.mxu0 0.0
    %471 = vmatpush1.msra.mxu0 0.0
    %472 = vmatprep.subr.mxu0 0.0
    %473 = vmatpush1.msra.mxu0 0.0
    %474 = vmatprep.subr.mxu0 0.0
    %475 = vmatpush1.msra.mxu0 0.0
    %476 = vmatprep.subr.mxu0 0.0
    %477 = vmatpush1.msra.mxu0 0.0
    %478 = vmatprep.subr.mxu0 0.0
    %479 = vmatpush1.msra.mxu0 0.0
    %480 = vmatprep.subr.mxu0 0.0
    %481 = vmatpush1.msra.mxu0 0.0
    %482 = vmatprep.subr.mxu0 0.0
    %483 = vmatpush1.msra.mxu0 0.0
    %484 = vmatprep.subr.mxu0 0.0
    %485 = vmatpush1.msra.mxu0 0.0
    %486 = vmatprep.subr.mxu0 0.0
    %487 = vmatpush1.msra.mxu0 0.0
    %488 = vmatprep.subr.mxu0 0.0
    %489 = vmatpush1.msra.mxu0 0.0
    %490 = vmatprep.subr.mxu0 0.0
    %491 = vmatpush1.msra.mxu0 0.0
    %492 = vmatprep.subr.mxu0 0.0
    %493 = vmatpush1.msra.mxu0 0.0
    %494 = vmatprep.subr.mxu0 0.0
    %495 = vmatpush1.msra.mxu0 0.0
    %496 = vmatprep.mubr.f32.mxu0 0.0
    %497 = vmatmul.mubr.f32.gmra.mrb[0].mxu0 %v71
    %v498 = vpop.f32.mrb[0].mxu0
    %v499 = vadd.f32 0.0, %v498
    %v500 = vpop.f32.mrb[0].mxu0
    %501 = vmatprep.mubr.f32.mxu0 0.0
    %502 = vmatmul.mubr.f32.gmra.mrb[0].mxu0 %v72
    %v503 = vpop.f32.mrb[0].mxu0
    %v504 = vadd.f32 0.0, %v503
    %v505 = vpop.f32.mrb[0].mxu0
    %506 = vmatprep.mubr.f32.mxu0 0.0
    %507 = vmatmul.mubr.f32.gmra.mrb[0].mxu0 %v73
    %v508 = vpop.f32.mrb[0].mxu0
    %v509 = vadd.f32 0.0, %v508
    %v510 = vpop.f32.mrb[0].mxu0
    %511 = vmatprep.mubr.f32.mxu0 0.0
    %512 = vmatmul.mubr.f32.gmra.mrb[0].mxu0 %v74
    %v513 = vpop.f32.mrb[0].mxu0
    %v514 = vadd.f32 0.0, %v513
    %v515 = vpop.f32.mrb[0].mxu0
    %516 = vdwg.mxu0
    %v517 = vadd.f32 %v428, %v499
    %v518 = vadd.f32 %v429, %v504
    %v519 = vadd.f32 %v430, %v509
    %v520 = vadd.f32 %v431, %v514
    %521 = vst [vmem:[#allocation2 + $0x40] sm:$0xff] %v517
    %522 = vst [vmem:[#allocation2 + $0x48] sm:$0xff] %v518
    %523 = vst [vmem:[#allocation2 + $0x50] sm:$0xff] %v519
    %524 = vst [vmem:[#allocation2 + $0x58] sm:$0xff] %v520
    %v525 = vld [vmem:[#allocation3 + $0x3] sm:$0x1]
    %v526 = vlaneseq
    %v527 = vshrl.u32 %v526, 7
    %v528 = vsub.s32 0, %v527
    %v529 = vrot.slane %v525, %v528
    %vm530 = vcmp.eq.s32.totalorder %v55, %v529
    %vm531 = vcmp.eq.s32.totalorder %v56, %v529
    %vm532 = vcmp.eq.s32.totalorder %v57, %v529
    %vm533 = vcmp.eq.s32.totalorder %v58, %v529
    %vm534 = vcmp.eq.s32.totalorder %v59, %v529
    %vm535 = vcmp.eq.s32.totalorder %v60, %v529
    %vm536 = vcmp.eq.s32.totalorder %v61, %v529
    %vm537 = vcmp.eq.s32.totalorder %v62, %v529
    %vm538 = vcmp.eq.s32.totalorder %v63, %v529
    %vm539 = vcmp.eq.s32.totalorder %v64, %v529
    %vm540 = vcmp.eq.s32.totalorder %v65, %v529
    %vm541 = vcmp.eq.s32.totalorder %v66, %v529
    %vm542 = vcmp.eq.s32.totalorder %v67, %v529
    %vm543 = vcmp.eq.s32.totalorder %v68, %v529
    %vm544 = vcmp.eq.s32.totalorder %v69, %v529
    %vm545 = vcmp.eq.s32.totalorder %v70, %v529
    %v546 = vsel %vm530, 1, 0
    %v547 = vsel %vm531, 1, 0
    %v548 = vsel %vm532, 1, 0
    %v549 = vsel %vm533, 1, 0
    %v550 = vsel %vm534, 1, 0
    %v551 = vsel %vm535, 1, 0
    %v552 = vsel %vm536, 1, 0
    %v553 = vsel %vm537, 1, 0
    %v554 = vsel %vm538, 1, 0
    %v555 = vsel %vm539, 1, 0
    %v556 = vsel %vm540, 1, 0
    %v557 = vsel %vm541, 1, 0
    %v558 = vsel %vm542, 1, 0
    %v559 = vsel %vm543, 1, 0
    %v560 = vsel %vm544, 1, 0
    %v561 = vsel %vm545, 1, 0
    %v562 = vcvt.s32.f32 %v546
    %v563 = vcvt.s32.f32 %v547
    %v564 = vcvt.s32.f32 %v548
    %v565 = vcvt.s32.f32 %v549
    %v566 = vcvt.s32.f32 %v550
    %v567 = vcvt.s32.f32 %v551
    %v568 = vcvt.s32.f32 %v552
    %v569 = vcvt.s32.f32 %v553
    %v570 = vcvt.s32.f32 %v554
    %v571 = vcvt.s32.f32 %v555
    %v572 = vcvt.s32.f32 %v556
    %v573 = vcvt.s32.f32 %v557
    %v574 = vcvt.s32.f32 %v558
    %v575 = vcvt.s32.f32 %v559
    %v576 = vcvt.s32.f32 %v560
    %v577 = vcvt.s32.f32 %v561
    %v578 = vld [vmem:[#allocation2 + $0x60] sm:$0xff]
    %v579 = vld [vmem:[#allocation2 + $0x68] sm:$0xff]
    %v580 = vld [vmem:[#allocation2 + $0x70] sm:$0xff]
    %v581 = vld [vmem:[#allocation2 + $0x78] sm:$0xff]
    %582 = vmatprep.subr.mxu0 0.0
    %583 = vmatpush1.msra.mxu0 %v562
    %584 = vmatprep.subr.mxu0 0.0
    %585 = vmatpush1.msra.mxu0 %v563
    %586 = vmatprep.subr.mxu0 0.0
    %587 = vmatpush1.msra.mxu0 %v564
    %588 = vmatprep.subr.mxu0 0.0
    %589 = vmatpush1.msra.mxu0 %v565
    %590 = vmatprep.subr.mxu0 0.0
    %591 = vmatpush1.msra.mxu0 %v566
    %592 = vmatprep.subr.mxu0 0.0
    %593 = vmatpush1.msra.mxu0 %v567
    %594 = vmatprep.subr.mxu0 0.0
    %595 = vmatpush1.msra.mxu0 %v568
    %596 = vmatprep.subr.mxu0 0.0
    %597 = vmatpush1.msra.mxu0 %v569
    %598 = vmatprep.subr.mxu0 0.0
    %599 = vmatpush1.msra.mxu0 %v570
    %600 = vmatprep.subr.mxu0 0.0
    %601 = vmatpush1.msra.mxu0 %v571
    %602 = vmatprep.subr.mxu0 0.0
    %603 = vmatpush1.msra.mxu0 %v572
    %604 = vmatprep.subr.mxu0 0.0
    %605 = vmatpush1.msra.mxu0 %v573
    %606 = vmatprep.subr.mxu0 0.0
    %607 = vmatpush1.msra.mxu0 %v574
    %608 = vmatprep.subr.mxu0 0.0
    %609 = vmatpush1.msra.mxu0 %v575
    %610 = vmatprep.subr.mxu0 0.0
    %611 = vmatpush1.msra.mxu0 %v576
    %612 = vmatprep.subr.mxu0 0.0
    %613 = vmatpush1.msra.mxu0 %v577
    %614 = vmatprep.subr.mxu0 0.0
    %615 = vmatpush1.msra.mxu0 0.0
    %616 = vmatprep.subr.mxu0 0.0
    %617 = vmatpush1.msra.mxu0 0.0
    %618 = vmatprep.subr.mxu0 0.0
    %619 = vmatpush1.msra.mxu0 0.0
    %620 = vmatprep.subr.mxu0 0.0
    %621 = vmatpush1.msra.mxu0 0.0
    %622 = vmatprep.subr.mxu0 0.0
    %623 = vmatpush1.msra.mxu0 0.0
    %624 = vmatprep.subr.mxu0 0.0
    %625 = vmatpush1.msra.mxu0 0.0
    %626 = vmatprep.subr.mxu0 0.0
    %627 = vmatpush1.msra.mxu0 0.0
    %628 = vmatprep.subr.mxu0 0.0
    %629 = vmatpush1.msra.mxu0 0.0
    %630 = vmatprep.subr.mxu0 0.0
    %631 = vmatpush1.msra.mxu0 0.0
    %632 = vmatprep.subr.mxu0 0.0
    %633 = vmatpush1.msra.mxu0 0.0
    %634 = vmatprep.subr.mxu0 0.0
    %635 = vmatpush1.msra.mxu0 0.0
    %636 = vmatprep.subr.mxu0 0.0
    %637 = vmatpush1.msra.mxu0 0.0
    %638 = vmatprep.subr.mxu0 0.0
    %639 = vmatpush1.msra.mxu0 0.0
    %640 = vmatprep.subr.mxu0 0.0
    %641 = vmatpush1.msra.mxu0 0.0
    %642 = vmatprep.subr.mxu0 0.0
    %643 = vmatpush1.msra.mxu0 0.0
    %644 = vmatprep.subr.mxu0 0.0
    %645 = vmatpush1.msra.mxu0 0.0
    %646 = vmatprep.mubr.f32.mxu0 0.0
    %647 = vmatmul.mubr.f32.gmra.mrb[0].mxu0 %v71
    %v648 = vpop.f32.mrb[0].mxu0
    %v649 = vadd.f32 0.0, %v648
    %v650 = vpop.f32.mrb[0].mxu0
    %651 = vmatprep.mubr.f32.mxu0 0.0
    %652 = vmatmul.mubr.f32.gmra.mrb[0].mxu0 %v72
    %v653 = vpop.f32.mrb[0].mxu0
    %v654 = vadd.f32 0.0, %v653
    %v655 = vpop.f32.mrb[0].mxu0
    %656 = vmatprep.mubr.f32.mxu0 0.0
    %657 = vmatmul.mubr.f32.gmra.mrb[0].mxu0 %v73
    %v658 = vpop.f32.mrb[0].mxu0
    %v659 = vadd.f32 0.0, %v658
    %v660 = vpop.f32.mrb[0].mxu0
    %661 = vmatprep.mubr.f32.mxu0 0.0
    %662 = vmatmul.mubr.f32.gmra.mrb[0].mxu0 %v74
    %v663 = vpop.f32.mrb[0].mxu0
    %v664 = vadd.f32 0.0, %v663
    %v665 = vpop.f32.mrb[0].mxu0
    %666 = vdwg.mxu0
    %v667 = vadd.f32 %v578, %v649
    %v668 = vadd.f32 %v579, %v654
    %v669 = vadd.f32 %v580, %v659
    %v670 = vadd.f32 %v581, %v664
    %671 = vst [vmem:[#allocation2 + $0x60] sm:$0xff] %v667
    %672 = vst [vmem:[#allocation2 + $0x68] sm:$0xff] %v668
    %673 = vst [vmem:[#allocation2 + $0x70] sm:$0xff] %v669
    %674 = vst [vmem:[#allocation2 + $0x78] sm:$0xff] %v670
    %v675 = vld [vmem:[#allocation2] sm:$0xff]
    %v676 = vld [vmem:[#allocation2 + $0x8] sm:$0xff]
    %v677 = vld [vmem:[#allocation2 + $0x10] sm:$0xff]
    %v678 = vld [vmem:[#allocation2 + $0x18] sm:$0xff]
    %v679 = vld [vmem:[#allocation2 + $0x20] sm:$0xff]
    %v680 = vld [vmem:[#allocation2 + $0x28] sm:$0xff]
    %v681 = vld [vmem:[#allocation2 + $0x30] sm:$0xff]
    %v682 = vld [vmem:[#allocation2 + $0x38] sm:$0xff]
    %v683 = vld [vmem:[#allocation2 + $0x40] sm:$0xff]
    %v684 = vld [vmem:[#allocation2 + $0x48] sm:$0xff]
    %v685 = vld [vmem:[#allocation2 + $0x50] sm:$0xff]
    %v686 = vld [vmem:[#allocation2 + $0x58] sm:$0xff]
    %v687 = vld [vmem:[#allocation2 + $0x60] sm:$0xff]
    %v688 = vld [vmem:[#allocation2 + $0x68] sm:$0xff]
    %v689 = vld [vmem:[#allocation2 + $0x70] sm:$0xff]
    %v690 = vld [vmem:[#allocation2 + $0x78] sm:$0xff]
    %691 = vxpose.xlu0.b32.start [1/16] %v675, 128
    %692 = vxpose.xlu0.b32.cont [2/16] %v676, 128
    %693 = vxpose.xlu0.b32.cont [3/16] %v677, 128
    %694 = vxpose.xlu0.b32.cont [4/16] %v678, 128
    %695 = vxpose.xlu0.b32.cont [5/16] %v679, 128
    %696 = vxpose.xlu0.b32.cont [6/16] %v680, 128
    %697 = vxpose.xlu0.b32.cont [7/16] %v681, 128
    %698 = vxpose.xlu0.b32.cont [8/16] %v682, 128
    %699 = vxpose.xlu0.b32.cont [9/16] %v683, 128
    %700 = vxpose.xlu0.b32.cont [10/16] %v684, 128
    %701 = vxpose.xlu0.b32.cont [11/16] %v685, 128
    %702 = vxpose.xlu0.b32.cont [12/16] %v686, 128
    %703 = vxpose.xlu0.b32.cont [13/16] %v687, 128
    %704 = vxpose.xlu0.b32.cont [14/16] %v688, 128
    %705 = vxpose.xlu0.b32.cont [15/16] %v689, 128
    %706 = vxpose.xlu0.b32.end [16/16] %v690, 128
    %v707 = vpop.trf.xlu0
    %v708 = vpop.trf.xlu0
    %v709 = vpop.trf.xlu0
    %v710 = vpop.trf.xlu0
    %v711 = vpop.trf.xlu0
    %v712 = vpop.trf.xlu0
    %v713 = vpop.trf.xlu0
    %v714 = vpop.trf.xlu0
    %v715 = vpop.trf.xlu0
    %v716 = vpop.trf.xlu0
    %v717 = vpop.trf.xlu0
    %v718 = vpop.trf.xlu0
    %v719 = vpop.trf.xlu0
    %v720 = vpop.trf.xlu0
    %v721 = vpop.trf.xlu0
    %v722 = vpop.trf.xlu0
    %723 = vst [vmem:[#allocation8] sm:$0xff] %v707
    %724 = vst [vmem:[#allocation8 + $0x8] sm:$0xff] %v708
    %725 = vst [vmem:[#allocation8 + $0x10] sm:$0xff] %v709
    %726 = vst [vmem:[#allocation8 + $0x18] sm:$0xff] %v710
    %727 = vst [vmem:[#allocation8 + $0x20] sm:$0xff] %v711
    %728 = vst [vmem:[#allocation8 + $0x28] sm:$0xff] %v712
    %729 = vst [vmem:[#allocation8 + $0x30] sm:$0xff] %v713
    %730 = vst [vmem:[#allocation8 + $0x38] sm:$0xff] %v714
    %731 = vst [vmem:[#allocation8 + $0x40] sm:$0xff] %v715
    %732 = vst [vmem:[#allocation8 + $0x48] sm:$0xff] %v716
    %733 = vst [vmem:[#allocation8 + $0x50] sm:$0xff] %v717
    %734 = vst [vmem:[#allocation8 + $0x58] sm:$0xff] %v718
    %735 = vst [vmem:[#allocation8 + $0x60] sm:$0xff] %v719
    %736 = vst [vmem:[#allocation8 + $0x68] sm:$0xff] %v720
    %737 = vst [vmem:[#allocation8 + $0x70] sm:$0xff] %v721
    %738 = vst [vmem:[#allocation8 + $0x78] sm:$0xff] %v722
    // Predicated region
    $region18: #{tpu_custom_call.1} parent=1 // pred_check
      _
    $region19: #{tpu_custom_call.1} parent=1 // pred_check_branch
      %740 = sbr.rel (0) target = $region21
    $region20: #{tpu_custom_call.1} parent=1 // pred_region
      %s742 = ssub.s32 2048, 2048
      %743 = vsyncadd [#allocation5], %s742
      %s744 = sshll.u32 [#allocation8], 4
      %s745 = int_to_ptr.vmem [resolvable:$true] %s744
      %750 = dma.vmem_to_hbm [thread:$0]  %s745, 2048, %s2, [#allocation5], 128, 128, 8
    $region21: #{tpu_custom_call.1} parent=1 // pred_fallthru
      _
    // Predicated region
    $region22: #{tpu_custom_call.1} parent=1 // pred_check
      _
    $region23: #{tpu_custom_call.1} parent=1 // pred_check_branch
      %752 = sbr.rel (0) target = $region25
    $region24: #{tpu_custom_call.1} parent=1 // pred_region
      %753 = dma.done [#allocation5], 2048
    $region25: #{tpu_custom_call.1} parent=1 // pred_fallthru
      _
    %754 = vsyncpa [#allocation4], 1
    %755 = vsyncpa [#allocation7], 1
    %756 = vsyncpa [#allocation5], 1

// kernel: tpu_custom_call.1
$region0: #{tpu_custom_call.1}
  #allocation0 [shape = 'u32[]', space=smem, size = 0x4, offset = 0x4, fixed_abs, tag = 'smem constant byte address 0x4 - core index']
  #allocation1 [shape = 'u32[144,128]{1,0:T(1,128)}', space=vmem, size = 0x12000, scoped, tag = 'internal scratch']
  #allocation2 [shape = 'f32[128,128]{1,0:T(8,128)}', space=vmem, size = 0x10000, scoped, tag = 'scratch operand']
  %s0 = inlined_call_operand.hbm [shape: s32[4,128], index: 0, kind: input, shape index: {}]
  %s1 = inlined_call_operand.hbm [shape: f32[1,32,128], index: 1, kind: input, shape index: {}]
  %s2 = inlined_call_operand.hbm [shape: f32[128,128], index: 2, kind: output, shape index: {}]
  %s3 = sld [smem:[#allocation0]]
  $region26: #{tpu_custom_call.1} parent=0
    _
  %s5 = ssub.s32 1, %s3
  %s6 = scalar_select 0, %s5, %s3
  $region1: #{tpu_custom_call.1} parent=0
    #allocation3 [shape = 'u8[2048]{0}', space=vmem, size = 0x800, scoped, tag = 'input window, operand 0, single buffered']
    #allocation4 [shape = 's32[1]{0}', space=sflag, size = 0x4, scoped, tag = 'scoped memory for tpu_custom_call.1']
    #allocation5 [shape = 's32[1]{0}', space=sflag, size = 0x4, scoped, tag = 'scoped memory for tpu_custom_call.1']
    #allocation6 [shape = 'u8[16384]{0}', space=vmem, size = 0x4000, scoped, tag = 'input window, operand 1, single buffered']
    #allocation7 [shape = 's32[1]{0}', space=sflag, size = 0x4, scoped, tag = 'scoped memory for tpu_custom_call.1']
    #allocation8 [shape = 'u8[65536]{0}', space=vmem, size = 0x10000, scoped, tag = 'output window, operand 0, single buffered']
    %7 = vsyncpa [#allocation4], 0
    %8 = vsyncpa [#allocation7], 0
    %9 = vsyncpa [#allocation5], 0
    // Predicated region
    $region2: #{tpu_custom_call.1} parent=1 // pred_check
      _
    $region3: #{tpu_custom_call.1} parent=1 // pred_check_branch
      %11 = sbr.rel (0) target = $region5
    $region4: #{tpu_custom_call.1} parent=1 // pred_region
      %s13 = ssub.s32 64, 64
      %14 = vsyncadd [#allocation4], %s13
      %s16 = sshll.u32 [#allocation3], 4
      %s17 = int_to_ptr.vmem [resolvable:$true] %s16
      %19 = dma.hbm_to_vmem [thread:$0]  %s0, 64, %s17, [#allocation4]
    $region5: #{tpu_custom_call.1} parent=1 // pred_fallthru
      _
    // Predicated region
    $region6: #{tpu_custom_call.1} parent=1 // pred_check
      _
    $region7: #{tpu_custom_call.1} parent=1 // pred_check_branch
      %21 = sbr.rel (0) target = $region9
    $region8: #{tpu_custom_call.1} parent=1 // pred_region
      %s23 = ssub.s32 512, 512
      %24 = vsyncadd [#allocation7], %s23
      %s25 = sshll.u32 [#allocation6], 4
      %s26 = int_to_ptr.vmem [resolvable:$true] %s25
      %31 = dma.hbm_to_vmem [thread:$0]  %s1, 512, %s26, [#allocation7], 128, 128, 8
    $region9: #{tpu_custom_call.1} parent=1 // pred_fallthru
      _
    // Predicated region
    $region10: #{tpu_custom_call.1} parent=1 // pred_check
      _
    $region11: #{tpu_custom_call.1} parent=1 // pred_check_branch
      %33 = sbr.rel (0) target = $region13
    $region12: #{tpu_custom_call.1} parent=1 // pred_region
      %34 = dma.done [#allocation4], 64
    $region13: #{tpu_custom_call.1} parent=1 // pred_fallthru
      _
    // Predicated region
    $region14: #{tpu_custom_call.1} parent=1 // pred_check
      _
    $region15: #{tpu_custom_call.1} parent=1 // pred_check_branch
      %36 = sbr.rel (0) target = $region17
    $region16: #{tpu_custom_call.1} parent=1 // pred_region
      %37 = dma.done [#allocation7], 512
    $region17: #{tpu_custom_call.1} parent=1 // pred_fallthru
      _
    %38 = vst [vmem:[#allocation2] sm:$0xff] 0.0
    %39 = vst [vmem:[#allocation2 + $0x8] sm:$0xff] 0.0
    %40 = vst [vmem:[#allocation2 + $0x10] sm:$0xff] 0.0
    %41 = vst [vmem:[#allocation2 + $0x18] sm:$0xff] 0.0
    %42 = vst [vmem:[#allocation2 + $0x20] sm:$0xff] 0.0
    %43 = vst [vmem:[#allocation2 + $0x28] sm:$0xff] 0.0
    %44 = vst [vmem:[#allocation2 + $0x30] sm:$0xff] 0.0
    %45 = vst [vmem:[#allocation2 + $0x38] sm:$0xff] 0.0
    %46 = vst [vmem:[#allocation2 + $0x40] sm:$0xff] 0.0
    %47 = vst [vmem:[#allocation2 + $0x48] sm:$0xff] 0.0
    %48 = vst [vmem:[#allocation2 + $0x50] sm:$0xff] 0.0
    %49 = vst [vmem:[#allocation2 + $0x58] sm:$0xff] 0.0
    %50 = vst [vmem:[#allocation2 + $0x60] sm:$0xff] 0.0
    %51 = vst [vmem:[#allocation2 + $0x68] sm:$0xff] 0.0
    %52 = vst [vmem:[#allocation2 + $0x70] sm:$0xff] 0.0
    %53 = vst [vmem:[#allocation2 + $0x78] sm:$0xff] 0.0
    %v54 = vlaneseq
    %v55 = vshrl.u32 %v54, 7
    %v56 = vadd.s32 %v55, 8
    %v57 = vadd.s32 %v55, 16
    %v58 = vadd.s32 %v55, 24
    %v59 = vadd.s32 %v55, 32
    %v60 = vadd.s32 %v55, 40
    %v61 = vadd.s32 %v55, 48
    %v62 = vadd.s32 %v55, 56
    %v63 = vadd.s32 %v55, 64
    %v64 = vadd.s32 %v55, 72
    %v65 = vadd.s32 %v55, 80
    %v66 = vadd.s32 %v55, 88
    %v67 = vadd.s32 %v55, 96
    %v68 = vadd.s32 %v55, 104
    %v69 = vadd.s32 %v55, 112
    %v70 = vadd.s32 %v55, 120
    %v71 = vld [vmem:[#allocation6] sm:$0xff]
    %v72 = vld [vmem:[#allocation6 + $0x8] sm:$0xff]
    %v73 = vld [vmem:[#allocation6 + $0x10] sm:$0xff]
    %v74 = vld [vmem:[#allocation6 + $0x18] sm:$0xff]
    %v75 = vld [vmem:[#allocation3] sm:$0x1]
    %v76 = vlaneseq
    %v77 = vshrl.u32 %v76, 7
    %v78 = vsub.s32 0, %v77
    %v79 = vrot.slane %v75, %v78
    %vm80 = vcmp.eq.s32.totalorder %v55, %v79
    %vm81 = vcmp.eq.s32.totalorder %v56, %v79
    %vm82 = vcmp.eq.s32.totalorder %v57, %v79
    %vm83 = vcmp.eq.s32.totalorder %v58, %v79
    %vm84 = vcmp.eq.s32.totalorder %v59, %v79
    %vm85 = vcmp.eq.s32.totalorder %v60, %v79
    %vm86 = vcmp.eq.s32.totalorder %v61, %v79
    %vm87 = vcmp.eq.s32.totalorder %v62, %v79
    %vm88 = vcmp.eq.s32.totalorder %v63, %v79
    %vm89 = vcmp.eq.s32.totalorder %v64, %v79
    %vm90 = vcmp.eq.s32.totalorder %v65, %v79
    %vm91 = vcmp.eq.s32.totalorder %v66, %v79
    %vm92 = vcmp.eq.s32.totalorder %v67, %v79
    %vm93 = vcmp.eq.s32.totalorder %v68, %v79
    %vm94 = vcmp.eq.s32.totalorder %v69, %v79
    %vm95 = vcmp.eq.s32.totalorder %v70, %v79
    %v96 = vsel %vm80, 1, 0
    %v97 = vsel %vm81, 1, 0
    %v98 = vsel %vm82, 1, 0
    %v99 = vsel %vm83, 1, 0
    %v100 = vsel %vm84, 1, 0
    %v101 = vsel %vm85, 1, 0
    %v102 = vsel %vm86, 1, 0
    %v103 = vsel %vm87, 1, 0
    %v104 = vsel %vm88, 1, 0
    %v105 = vsel %vm89, 1, 0
    %v106 = vsel %vm90, 1, 0
    %v107 = vsel %vm91, 1, 0
    %v108 = vsel %vm92, 1, 0
    %v109 = vsel %vm93, 1, 0
    %v110 = vsel %vm94, 1, 0
    %v111 = vsel %vm95, 1, 0
    %v112 = vcvt.s32.f32 %v96
    %v113 = vcvt.s32.f32 %v97
    %v114 = vcvt.s32.f32 %v98
    %v115 = vcvt.s32.f32 %v99
    %v116 = vcvt.s32.f32 %v100
    %v117 = vcvt.s32.f32 %v101
    %v118 = vcvt.s32.f32 %v102
    %v119 = vcvt.s32.f32 %v103
    %v120 = vcvt.s32.f32 %v104
    %v121 = vcvt.s32.f32 %v105
    %v122 = vcvt.s32.f32 %v106
    %v123 = vcvt.s32.f32 %v107
    %v124 = vcvt.s32.f32 %v108
    %v125 = vcvt.s32.f32 %v109
    %v126 = vcvt.s32.f32 %v110
    %v127 = vcvt.s32.f32 %v111
    %v128 = vld [vmem:[#allocation2] sm:$0xff]
    %v129 = vld [vmem:[#allocation2 + $0x8] sm:$0xff]
    %v130 = vld [vmem:[#allocation2 + $0x10] sm:$0xff]
    %v131 = vld [vmem:[#allocation2 + $0x18] sm:$0xff]
    %132 = vmatprep.subr.mxu0 0.0
    %133 = vmatpush1.msra.mxu0 %v112
    %134 = vmatprep.subr.mxu0 0.0
    %135 = vmatpush1.msra.mxu0 %v113
    %136 = vmatprep.subr.mxu0 0.0
    %137 = vmatpush1.msra.mxu0 %v114
    %138 = vmatprep.subr.mxu0 0.0
    %139 = vmatpush1.msra.mxu0 %v115
    %140 = vmatprep.subr.mxu0 0.0
    %141 = vmatpush1.msra.mxu0 %v116
    %142 = vmatprep.subr.mxu0 0.0
    %143 = vmatpush1.msra.mxu0 %v117
    %144 = vmatprep.subr.mxu0 0.0
    %145 = vmatpush1.msra.mxu0 %v118
    %146 = vmatprep.subr.mxu0 0.0
    %147 = vmatpush1.msra.mxu0 %v119
    %148 = vmatprep.subr.mxu0 0.0
    %149 = vmatpush1.msra.mxu0 %v120
    %150 = vmatprep.subr.mxu0 0.0
    %151 = vmatpush1.msra.mxu0 %v121
    %152 = vmatprep.subr.mxu0 0.0
    %153 = vmatpush1.msra.mxu0 %v122
    %154 = vmatprep.subr.mxu0 0.0
    %155 = vmatpush1.msra.mxu0 %v123
    %156 = vmatprep.subr.mxu0 0.0
    %157 = vmatpush1.msra.mxu0 %v124
    %158 = vmatprep.subr.mxu0 0.0
    %159 = vmatpush1.msra.mxu0 %v125
    %160 = vmatprep.subr.mxu0 0.0
    %161 = vmatpush1.msra.mxu0 %v126
    %162 = vmatprep.subr.mxu0 0.0
    %163 = vmatpush1.msra.mxu0 %v127
    %164 = vmatprep.subr.mxu0 0.0
    %165 = vmatpush1.msra.mxu0 0.0
    %166 = vmatprep.subr.mxu0 0.0
    %167 = vmatpush1.msra.mxu0 0.0
    %168 = vmatprep.subr.mxu0 0.0
    %169 = vmatpush1.msra.mxu0 0.0
    %170 = vmatprep.subr.mxu0 0.0
    %171 = vmatpush1.msra.mxu0 0.0
    %172 = vmatprep.subr.mxu0 0.0
    %173 = vmatpush1.msra.mxu0 0.0
    %174 = vmatprep.subr.mxu0 0.0
    %175 = vmatpush1.msra.mxu0 0.0
    %176 = vmatprep.subr.mxu0 0.0
    %177 = vmatpush1.msra.mxu0 0.0
    %178 = vmatprep.subr.mxu0 0.0
    %179 = vmatpush1.msra.mxu0 0.0
    %180 = vmatprep.subr.mxu0 0.0
    %181 = vmatpush1.msra.mxu0 0.0
    %182 = vmatprep.subr.mxu0 0.0
    %183 = vmatpush1.msra.mxu0 0.0
    %184 = vmatprep.subr.mxu0 0.0
    %185 = vmatpush1.msra.mxu0 0.0
    %186 = vmatprep.subr.mxu0 0.0
    %187 = vmatpush1.msra.mxu0 0.0
    %188 = vmatprep.subr.mxu0 0.0
    %189 = vmatpush1.msra.mxu0 0.0
    %190 = vmatprep.subr.mxu0 0.0
    %191 = vmatpush1.msra.mxu0 0.0
    %192 = vmatprep.subr.mxu0 0.0
    %193 = vmatpush1.msra.mxu0 0.0
    %194 = vmatprep.subr.mxu0 0.0
    %195 = vmatpush1.msra.mxu0 0.0
    %196 = vmatprep.mubr.f32.mxu0 0.0
    %197 = vmatmul.mubr.f32.gmra.mrb[0].mxu0 %v71
    %v198 = vpop.f32.mrb[0].mxu0
    %v199 = vadd.f32 0.0, %v198
    %v200 = vpop.f32.mrb[0].mxu0
    %201 = vmatprep.mubr.f32.mxu0 0.0
    %202 = vmatmul.mubr.f32.gmra.mrb[0].mxu0 %v72
    %v203 = vpop.f32.mrb[0].mxu0
    %v204 = vadd.f32 0.0, %v203
    %v205 = vpop.f32.mrb[0].mxu0
    %206 = vmatprep.mubr.f32.mxu0 0.0
    %207 = vmatmul.mubr.f32.gmra.mrb[0].mxu0 %v73
    %v208 = vpop.f32.mrb[0].mxu0
    %v209 = vadd.f32 0.0, %v208
    %v210 = vpop.f32.mrb[0].mxu0
    %211 = vmatprep.mubr.f32.mxu0 0.0
    %212 = vmatmul.mubr.f32.gmra.mrb[0].mxu0 %v74
    %v213 = vpop.f32.mrb[0].mxu0
    %v214 = vadd.f32 0.0, %v213
    %v215 = vpop.f32.mrb[0].mxu0
    %216 = vdwg.mxu0
    %v217 = vadd.f32 %v128, %v199
    %v218 = vadd.f32 %v129, %v204
    %v219 = vadd.f32 %v130, %v209
    %v220 = vadd.f32 %v131, %v214
    %221 = vst [vmem:[#allocation2] sm:$0xff] %v217
    %222 = vst [vmem:[#allocation2 + $0x8] sm:$0xff] %v218
    %223 = vst [vmem:[#allocation2 + $0x10] sm:$0xff] %v219
    %224 = vst [vmem:[#allocation2 + $0x18] sm:$0xff] %v220
    %v225 = vld [vmem:[#allocation3 + $0x1] sm:$0x1]
    %v226 = vlaneseq
    %v227 = vshrl.u32 %v226, 7
    %v228 = vsub.s32 0, %v227
    %v229 = vrot.slane %v225, %v228
    %vm230 = vcmp.eq.s32.totalorder %v55, %v229
    %vm231 = vcmp.eq.s32.totalorder %v56, %v229
    %vm232 = vcmp.eq.s32.totalorder %v57, %v229
    %vm233 = vcmp.eq.s32.totalorder %v58, %v229
    %vm234 = vcmp.eq.s32.totalorder %v59, %v229
    %vm235 = vcmp.eq.s32.totalorder %v60, %v229
    %vm236 = vcmp.eq.s32.totalorder %v61, %v229
    %vm237 = vcmp.eq.s32.totalorder %v62, %v229
    %vm238 = vcmp.eq.s32.totalorder %v63, %v229
    %vm239 = vcmp.eq.s32.totalorder %v64, %v229
    %vm240 = vcmp.eq.s32.totalorder %v65, %v229
    %vm241 = vcmp.eq.s32.totalorder %v66, %v229
    %vm242 = vcmp.eq.s32.totalorder %v67, %v229
    %vm243 = vcmp.eq.s32.totalorder %v68, %v229
    %vm244 = vcmp.eq.s32.totalorder %v69, %v229
    %vm245 = vcmp.eq.s32.totalorder %v70, %v229
    %v246 = vsel %vm230, 1, 0
    %v247 = vsel %vm231, 1, 0
    %v248 = vsel %vm232, 1, 0
    %v249 = vsel %vm233, 1, 0
    %v250 = vsel %vm234, 1, 0
    %v251 = vsel %vm235, 1, 0
    %v252 = vsel %vm236, 1, 0
    %v253 = vsel %vm237, 1, 0
    %v254 = vsel %vm238, 1, 0
    %v255 = vsel %vm239, 1, 0
    %v256 = vsel %vm240, 1, 0
    %v257 = vsel %vm241, 1, 0
    %v258 = vsel %vm242, 1, 0
    %v259 = vsel %vm243, 1, 0
    %v260 = vsel %vm244, 1, 0
    %v261 = vsel %vm245, 1, 0
    %v262 = vcvt.s32.f32 %v246
    %v263 = vcvt.s32.f32 %v247
    %v264 = vcvt.s32.f32 %v248
    %v265 = vcvt.s32.f32 %v249
    %v266 = vcvt.s32.f32 %v250
    %v267 = vcvt.s32.f32 %v251
    %v268 = vcvt.s32.f32 %v252
    %v269 = vcvt.s32.f32 %v253
    %v270 = vcvt.s32.f32 %v254
    %v271 = vcvt.s32.f32 %v255
    %v272 = vcvt.s32.f32 %v256
    %v273 = vcvt.s32.f32 %v257
    %v274 = vcvt.s32.f32 %v258
    %v275 = vcvt.s32.f32 %v259
    %v276 = vcvt.s32.f32 %v260
    %v277 = vcvt.s32.f32 %v261
    %v278 = vld [vmem:[#allocation2 + $0x20] sm:$0xff]
    %v279 = vld [vmem:[#allocation2 + $0x28] sm:$0xff]
    %v280 = vld [vmem:[#allocation2 + $0x30] sm:$0xff]
    %v281 = vld [vmem:[#allocation2 + $0x38] sm:$0xff]
    %282 = vmatprep.subr.mxu0 0.0
    %283 = vmatpush1.msra.mxu0 %v262
    %284 = vmatprep.subr.mxu0 0.0
    %285 = vmatpush1.msra.mxu0 %v263
    %286 = vmatprep.subr.mxu0 0.0
    %287 = vmatpush1.msra.mxu0 %v264
    %288 = vmatprep.subr.mxu0 0.0
    %289 = vmatpush1.msra.mxu0 %v265
    %290 = vmatprep.subr.mxu0 0.0
    %291 = vmatpush1.msra.mxu0 %v266
    %292 = vmatprep.subr.mxu0 0.0
    %293 = vmatpush1.msra.mxu0 %v267
    %294 = vmatprep.subr.mxu0 0.0
    %295 = vmatpush1.msra.mxu0 %v268
    %296 = vmatprep.subr.mxu0 0.0
    %297 = vmatpush1.msra.mxu0 %v269
    %298 = vmatprep.subr.mxu0 0.0
    %299 = vmatpush1.msra.mxu0 %v270
    %300 = vmatprep.subr.mxu0 0.0
    %301 = vmatpush1.msra.mxu0 %v271
    %302 = vmatprep.subr.mxu0 0.0
    %303 = vmatpush1.msra.mxu0 %v272
    %304 = vmatprep.subr.mxu0 0.0
    %305 = vmatpush1.msra.mxu0 %v273
    %306 = vmatprep.subr.mxu0 0.0
    %307 = vmatpush1.msra.mxu0 %v274
    %308 = vmatprep.subr.mxu0 0.0
    %309 = vmatpush1.msra.mxu0 %v275
    %310 = vmatprep.subr.mxu0 0.0
    %311 = vmatpush1.msra.mxu0 %v276
    %312 = vmatprep.subr.mxu0 0.0
    %313 = vmatpush1.msra.mxu0 %v277
    %314 = vmatprep.subr.mxu0 0.0
    %315 = vmatpush1.msra.mxu0 0.0
    %316 = vmatprep.subr.mxu0 0.0
    %317 = vmatpush1.msra.mxu0 0.0
    %318 = vmatprep.subr.mxu0 0.0
    %319 = vmatpush1.msra.mxu0 0.0
    %320 = vmatprep.subr.mxu0 0.0
    %321 = vmatpush1.msra.mxu0 0.0
    %322 = vmatprep.subr.mxu0 0.0
    %323 = vmatpush1.msra.mxu0 0.0
    %324 = vmatprep.subr.mxu0 0.0
    %325 = vmatpush1.msra.mxu0 0.0
    %326 = vmatprep.subr.mxu0 0.0
    %327 = vmatpush1.msra.mxu0 0.0
    %328 = vmatprep.subr.mxu0 0.0
    %329 = vmatpush1.msra.mxu0 0.0
    %330 = vmatprep.subr.mxu0 0.0
    %331 = vmatpush1.msra.mxu0 0.0
    %332 = vmatprep.subr.mxu0 0.0
    %333 = vmatpush1.msra.mxu0 0.0
    %334 = vmatprep.subr.mxu0 0.0
    %335 = vmatpush1.msra.mxu0 0.0
    %336 = vmatprep.subr.mxu0 0.0
    %337 = vmatpush1.msra.mxu0 0.0
    %338 = vmatprep.subr.mxu0 0.0
    %339 = vmatpush1.msra.mxu0 0.0
    %340 = vmatprep.subr.mxu0 0.0
    %341 = vmatpush1.msra.mxu0 0.0
    %342 = vmatprep.subr.mxu0 0.0
    %343 = vmatpush1.msra.mxu0 0.0
    %344 = vmatprep.subr.mxu0 0.0
    %345 = vmatpush1.msra.mxu0 0.0
    %346 = vmatprep.mubr.f32.mxu0 0.0
    %347 = vmatmul.mubr.f32.gmra.mrb[0].mxu0 %v71
    %v348 = vpop.f32.mrb[0].mxu0
    %v349 = vadd.f32 0.0, %v348
    %v350 = vpop.f32.mrb[0].mxu0
    %351 = vmatprep.mubr.f32.mxu0 0.0
    %352 = vmatmul.mubr.f32.gmra.mrb[0].mxu0 %v72
    %v353 = vpop.f32.mrb[0].mxu0
    %v354 = vadd.f32 0.0, %v353
    %v355 = vpop.f32.mrb[0].mxu0
    %356 = vmatprep.mubr.f32.mxu0 0.0
    %357 = vmatmul.mubr.f32.gmra.mrb[0].mxu0 %v73
    %v358 = vpop.f32.mrb[0].mxu0
    %v359 = vadd.f32 0.0, %v358
    %v360 = vpop.f32.mrb[0].mxu0
    %361 = vmatprep.mubr.f32.mxu0 0.0
    %362 = vmatmul.mubr.f32.gmra.mrb[0].mxu0 %v74
    %v363 = vpop.f32.mrb[0].mxu0
    %v364 = vadd.f32 0.0, %v363
    %v365 = vpop.f32.mrb[0].mxu0
    %366 = vdwg.mxu0
    %v367 = vadd.f32 %v278, %v349
    %v368 = vadd.f32 %v279, %v354
    %v369 = vadd.f32 %v280, %v359
    %v370 = vadd.f32 %v281, %v364
    %371 = vst [vmem:[#allocation2 + $0x20] sm:$0xff] %v367
    %372 = vst [vmem:[#allocation2 + $0x28] sm:$0xff] %v368
    %373 = vst [vmem:[#allocation2 + $0x30] sm:$0xff] %v369
    %374 = vst [vmem:[#allocation2 + $0x38] sm:$0xff] %v370
    %v375 = vld [vmem:[#allocation3 + $0x2] sm:$0x1]
    %v376 = vlaneseq
    %v377 = vshrl.u32 %v376, 7
    %v378 = vsub.s32 0, %v377
    %v379 = vrot.slane %v375, %v378
    %vm380 = vcmp.eq.s32.totalorder %v55, %v379
    %vm381 = vcmp.eq.s32.totalorder %v56, %v379
    %vm382 = vcmp.eq.s32.totalorder %v57, %v379
    %vm383 = vcmp.eq.s32.totalorder %v58, %v379
    %vm384 = vcmp.eq.s32.totalorder %v59, %v379
    %vm385 = vcmp.eq.s32.totalorder %v60, %v379
    %vm386 = vcmp.eq.s32.totalorder %v61, %v379
    %vm387 = vcmp.eq.s32.totalorder %v62, %v379
    %vm388 = vcmp.eq.s32.totalorder %v63, %v379
    %vm389 = vcmp.eq.s32.totalorder %v64, %v379
    %vm390 = vcmp.eq.s32.totalorder %v65, %v379
    %vm391 = vcmp.eq.s32.totalorder %v66, %v379
    %vm392 = vcmp.eq.s32.totalorder %v67, %v379
    %vm393 = vcmp.eq.s32.totalorder %v68, %v379
    %vm394 = vcmp.eq.s32.totalorder %v69, %v379
    %vm395 = vcmp.eq.s32.totalorder %v70, %v379
    %v396 = vsel %vm380, 1, 0
    %v397 = vsel %vm381, 1, 0
    %v398 = vsel %vm382, 1, 0
    %v399 = vsel %vm383, 1, 0
    %v400 = vsel %vm384, 1, 0
    %v401 = vsel %vm385, 1, 0
    %v402 = vsel %vm386, 1, 0
    %v403 = vsel %vm387, 1, 0
    %v404 = vsel %vm388, 1, 0
    %v405 = vsel %vm389, 1, 0
    %v406 = vsel %vm390, 1, 0
    %v407 = vsel %vm391, 1, 0
    %v408 = vsel %vm392, 1, 0
    %v409 = vsel %vm393, 1, 0
    %v410 = vsel %vm394, 1, 0
    %v411 = vsel %vm395, 1, 0
    %v412 = vcvt.s32.f32 %v396
    %v413 = vcvt.s32.f32 %v397
    %v414 = vcvt.s32.f32 %v398
    %v415 = vcvt.s32.f32 %v399
    %v416 = vcvt.s32.f32 %v400
    %v417 = vcvt.s32.f32 %v401
    %v418 = vcvt.s32.f32 %v402
    %v419 = vcvt.s32.f32 %v403
    %v420 = vcvt.s32.f32 %v404
    %v421 = vcvt.s32.f32 %v405
    %v422 = vcvt.s32.f32 %v406
    %v423 = vcvt.s32.f32 %v407
    %v424 = vcvt.s32.f32 %v408
    %v425 = vcvt.s32.f32 %v409
    %v426 = vcvt.s32.f32 %v410
    %v427 = vcvt.s32.f32 %v411
    %v428 = vld [vmem:[#allocation2 + $0x40] sm:$0xff]
    %v429 = vld [vmem:[#allocation2 + $0x48] sm:$0xff]
    %v430 = vld [vmem:[#allocation2 + $0x50] sm:$0xff]
    %v431 = vld [vmem:[#allocation2 + $0x58] sm:$0xff]
    %432 = vmatprep.subr.mxu0 0.0
    %433 = vmatpush1.msra.mxu0 %v412
    %434 = vmatprep.subr.mxu0 0.0
    %435 = vmatpush1.msra.mxu0 %v413
    %436 = vmatprep.subr.mxu0 0.0
    %437 = vmatpush1.msra.mxu0 %v414
    %438 = vmatprep.subr.mxu0 0.0
    %439 = vmatpush1.msra.mxu0 %v415
    %440 = vmatprep.subr.mxu0 0.0
    %441 = vmatpush1.msra.mxu0 %v416
    %442 = vmatprep.subr.mxu0 0.0
    %443 = vmatpush1.msra.mxu0 %v417
    %444 = vmatprep.subr.mxu0 0.0
    %445 = vmatpush1.msra.mxu0 %v418
    %446 = vmatprep.subr.mxu0 0.0
    %447 = vmatpush1.msra.mxu0 %v419
    %448 = vmatprep.subr.mxu0 0.0
    %449 = vmatpush1.msra.mxu0 %v420
    %450 = vmatprep.subr.mxu0 0.0
    %451 = vmatpush1.msra.mxu0 %v421
    %452 = vmatprep.subr.mxu0 0.0
    %453 = vmatpush1.msra.mxu0 %v422
    %454 = vmatprep.subr.mxu0 0.0
    %455 = vmatpush1.msra.mxu0 %v423
    %456 = vmatprep.subr.mxu0 0.0
    %457 = vmatpush1.msra.mxu0 %v424
    %458 = vmatprep.subr.mxu0 0.0
    %459 = vmatpush1.msra.mxu0 %v425
    %460 = vmatprep.subr.mxu0 0.0
    %461 = vmatpush1.msra.mxu0 %v426
    %462 = vmatprep.subr.mxu0 0.0
    %463 = vmatpush1.msra.mxu0 %v427
    %464 = vmatprep.subr.mxu0 0.0
    %465 = vmatpush1.msra.mxu0 0.0
    %466 = vmatprep.subr.mxu0 0.0
    %467 = vmatpush1.msra.mxu0 0.0
    %468 = vmatprep.subr.mxu0 0.0
    %469 = vmatpush1.msra.mxu0 0.0
    %470 = vmatprep.subr.mxu0 0.0
    %471 = vmatpush1.msra.mxu0 0.0
    %472 = vmatprep.subr.mxu0 0.0
    %473 = vmatpush1.msra.mxu0 0.0
    %474 = vmatprep.subr.mxu0 0.0
    %475 = vmatpush1.msra.mxu0 0.0
    %476 = vmatprep.subr.mxu0 0.0
    %477 = vmatpush1.msra.mxu0 0.0
    %478 = vmatprep.subr.mxu0 0.0
    %479 = vmatpush1.msra.mxu0 0.0
    %480 = vmatprep.subr.mxu0 0.0
    %481 = vmatpush1.msra.mxu0 0.0
    %482 = vmatprep.subr.mxu0 0.0
    %483 = vmatpush1.msra.mxu0 0.0
    %484 = vmatprep.subr.mxu0 0.0
    %485 = vmatpush1.msra.mxu0 0.0
    %486 = vmatprep.subr.mxu0 0.0
    %487 = vmatpush1.msra.mxu0 0.0
    %488 = vmatprep.subr.mxu0 0.0
    %489 = vmatpush1.msra.mxu0 0.0
    %490 = vmatprep.subr.mxu0 0.0
    %491 = vmatpush1.msra.mxu0 0.0
    %492 = vmatprep.subr.mxu0 0.0
    %493 = vmatpush1.msra.mxu0 0.0
    %494 = vmatprep.subr.mxu0 0.0
    %495 = vmatpush1.msra.mxu0 0.0
    %496 = vmatprep.mubr.f32.mxu0 0.0
    %497 = vmatmul.mubr.f32.gmra.mrb[0].mxu0 %v71
    %v498 = vpop.f32.mrb[0].mxu0
    %v499 = vadd.f32 0.0, %v498
    %v500 = vpop.f32.mrb[0].mxu0
    %501 = vmatprep.mubr.f32.mxu0 0.0
    %502 = vmatmul.mubr.f32.gmra.mrb[0].mxu0 %v72
    %v503 = vpop.f32.mrb[0].mxu0
    %v504 = vadd.f32 0.0, %v503
    %v505 = vpop.f32.mrb[0].mxu0
    %506 = vmatprep.mubr.f32.mxu0 0.0
    %507 = vmatmul.mubr.f32.gmra.mrb[0].mxu0 %v73
    %v508 = vpop.f32.mrb[0].mxu0
    %v509 = vadd.f32 0.0, %v508
    %v510 = vpop.f32.mrb[0].mxu0
    %511 = vmatprep.mubr.f32.mxu0 0.0
    %512 = vmatmul.mubr.f32.gmra.mrb[0].mxu0 %v74
    %v513 = vpop.f32.mrb[0].mxu0
    %v514 = vadd.f32 0.0, %v513
    %v515 = vpop.f32.mrb[0].mxu0
    %516 = vdwg.mxu0
    %v517 = vadd.f32 %v428, %v499
    %v518 = vadd.f32 %v429, %v504
    %v519 = vadd.f32 %v430, %v509
    %v520 = vadd.f32 %v431, %v514
    %521 = vst [vmem:[#allocation2 + $0x40] sm:$0xff] %v517
    %522 = vst [vmem:[#allocation2 + $0x48] sm:$0xff] %v518
    %523 = vst [vmem:[#allocation2 + $0x50] sm:$0xff] %v519
    %524 = vst [vmem:[#allocation2 + $0x58] sm:$0xff] %v520
    %v525 = vld [vmem:[#allocation3 + $0x3] sm:$0x1]
    %v526 = vlaneseq
    %v527 = vshrl.u32 %v526, 7
    %v528 = vsub.s32 0, %v527
    %v529 = vrot.slane %v525, %v528
    %vm530 = vcmp.eq.s32.totalorder %v55, %v529
    %vm531 = vcmp.eq.s32.totalorder %v56, %v529
    %vm532 = vcmp.eq.s32.totalorder %v57, %v529
    %vm533 = vcmp.eq.s32.totalorder %v58, %v529
    %vm534 = vcmp.eq.s32.totalorder %v59, %v529
    %vm535 = vcmp.eq.s32.totalorder %v60, %v529
    %vm536 = vcmp.eq.s32.totalorder %v61, %v529
    %vm537 = vcmp.eq.s32.totalorder %v62, %v529
    %vm538 = vcmp.eq.s32.totalorder %v63, %v529
    %vm539 = vcmp.eq.s32.totalorder %v64, %v529
    %vm540 = vcmp.eq.s32.totalorder %v65, %v529
    %vm541 = vcmp.eq.s32.totalorder %v66, %v529
    %vm542 = vcmp.eq.s32.totalorder %v67, %v529
    %vm543 = vcmp.eq.s32.totalorder %v68, %v529
    %vm544 = vcmp.eq.s32.totalorder %v69, %v529
    %vm545 = vcmp.eq.s32.totalorder %v70, %v529
    %v546 = vsel %vm530, 1, 0
    %v547 = vsel %vm531, 1, 0
    %v548 = vsel %vm532, 1, 0
    %v549 = vsel %vm533, 1, 0
    %v550 = vsel %vm534, 1, 0
    %v551 = vsel %vm535, 1, 0
    %v552 = vsel %vm536, 1, 0
    %v553 = vsel %vm537, 1, 0
    %v554 = vsel %vm538, 1, 0
    %v555 = vsel %vm539, 1, 0
    %v556 = vsel %vm540, 1, 0
    %v557 = vsel %vm541, 1, 0
    %v558 = vsel %vm542, 1, 0
    %v559 = vsel %vm543, 1, 0
    %v560 = vsel %vm544, 1, 0
    %v561 = vsel %vm545, 1, 0
    %v562 = vcvt.s32.f32 %v546
    %v563 = vcvt.s32.f32 %v547
    %v564 = vcvt.s32.f32 %v548
    %v565 = vcvt.s32.f32 %v549
    %v566 = vcvt.s32.f32 %v550
    %v567 = vcvt.s32.f32 %v551
    %v568 = vcvt.s32.f32 %v552
    %v569 = vcvt.s32.f32 %v553
    %v570 = vcvt.s32.f32 %v554
    %v571 = vcvt.s32.f32 %v555
    %v572 = vcvt.s32.f32 %v556
    %v573 = vcvt.s32.f32 %v557
    %v574 = vcvt.s32.f32 %v558
    %v575 = vcvt.s32.f32 %v559
    %v576 = vcvt.s32.f32 %v560
    %v577 = vcvt.s32.f32 %v561
    %v578 = vld [vmem:[#allocation2 + $0x60] sm:$0xff]
    %v579 = vld [vmem:[#allocation2 + $0x68] sm:$0xff]
    %v580 = vld [vmem:[#allocation2 + $0x70] sm:$0xff]
    %v581 = vld [vmem:[#allocation2 + $0x78] sm:$0xff]
    %582 = vmatprep.subr.mxu0 0.0
    %583 = vmatpush1.msra.mxu0 %v562
    %584 = vmatprep.subr.mxu0 0.0
    %585 = vmatpush1.msra.mxu0 %v563
    %586 = vmatprep.subr.mxu0 0.0
    %587 = vmatpush1.msra.mxu0 %v564
    %588 = vmatprep.subr.mxu0 0.0
    %589 = vmatpush1.msra.mxu0 %v565
    %590 = vmatprep.subr.mxu0 0.0
    %591 = vmatpush1.msra.mxu0 %v566
    %592 = vmatprep.subr.mxu0 0.0
    %593 = vmatpush1.msra.mxu0 %v567
    %594 = vmatprep.subr.mxu0 0.0
    %595 = vmatpush1.msra.mxu0 %v568
    %596 = vmatprep.subr.mxu0 0.0
    %597 = vmatpush1.msra.mxu0 %v569
    %598 = vmatprep.subr.mxu0 0.0
    %599 = vmatpush1.msra.mxu0 %v570
    %600 = vmatprep.subr.mxu0 0.0
    %601 = vmatpush1.msra.mxu0 %v571
    %602 = vmatprep.subr.mxu0 0.0
    %603 = vmatpush1.msra.mxu0 %v572
    %604 = vmatprep.subr.mxu0 0.0
    %605 = vmatpush1.msra.mxu0 %v573
    %606 = vmatprep.subr.mxu0 0.0
    %607 = vmatpush1.msra.mxu0 %v574
    %608 = vmatprep.subr.mxu0 0.0
    %609 = vmatpush1.msra.mxu0 %v575
    %610 = vmatprep.subr.mxu0 0.0
    %611 = vmatpush1.msra.mxu0 %v576
    %612 = vmatprep.subr.mxu0 0.0
    %613 = vmatpush1.msra.mxu0 %v577
    %614 = vmatprep.subr.mxu0 0.0
    %615 = vmatpush1.msra.mxu0 0.0
    %616 = vmatprep.subr.mxu0 0.0
    %617 = vmatpush1.msra.mxu0 0.0
    %618 = vmatprep.subr.mxu0 0.0
    %619 = vmatpush1.msra.mxu0 0.0
    %620 = vmatprep.subr.mxu0 0.0
    %621 = vmatpush1.msra.mxu0 0.0
    %622 = vmatprep.subr.mxu0 0.0
    %623 = vmatpush1.msra.mxu0 0.0
    %624 = vmatprep.subr.mxu0 0.0
    %625 = vmatpush1.msra.mxu0 0.0
    %626 = vmatprep.subr.mxu0 0.0
    %627 = vmatpush1.msra.mxu0 0.0
    %628 = vmatprep.subr.mxu0 0.0
    %629 = vmatpush1.msra.mxu0 0.0
    %630 = vmatprep.subr.mxu0 0.0
    %631 = vmatpush1.msra.mxu0 0.0
    %632 = vmatprep.subr.mxu0 0.0
    %633 = vmatpush1.msra.mxu0 0.0
    %634 = vmatprep.subr.mxu0 0.0
    %635 = vmatpush1.msra.mxu0 0.0
    %636 = vmatprep.subr.mxu0 0.0
    %637 = vmatpush1.msra.mxu0 0.0
    %638 = vmatprep.subr.mxu0 0.0
    %639 = vmatpush1.msra.mxu0 0.0
    %640 = vmatprep.subr.mxu0 0.0
    %641 = vmatpush1.msra.mxu0 0.0
    %642 = vmatprep.subr.mxu0 0.0
    %643 = vmatpush1.msra.mxu0 0.0
    %644 = vmatprep.subr.mxu0 0.0
    %645 = vmatpush1.msra.mxu0 0.0
    %646 = vmatprep.mubr.f32.mxu0 0.0
    %647 = vmatmul.mubr.f32.gmra.mrb[0].mxu0 %v71
    %v648 = vpop.f32.mrb[0].mxu0
    %v649 = vadd.f32 0.0, %v648
    %v650 = vpop.f32.mrb[0].mxu0
    %651 = vmatprep.mubr.f32.mxu0 0.0
    %652 = vmatmul.mubr.f32.gmra.mrb[0].mxu0 %v72
    %v653 = vpop.f32.mrb[0].mxu0
    %v654 = vadd.f32 0.0, %v653
    %v655 = vpop.f32.mrb[0].mxu0
    %656 = vmatprep.mubr.f32.mxu0 0.0
    %657 = vmatmul.mubr.f32.gmra.mrb[0].mxu0 %v73
    %v658 = vpop.f32.mrb[0].mxu0
    %v659 = vadd.f32 0.0, %v658
    %v660 = vpop.f32.mrb[0].mxu0
    %661 = vmatprep.mubr.f32.mxu0 0.0
    %662 = vmatmul.mubr.f32.gmra.mrb[0].mxu0 %v74
    %v663 = vpop.f32.mrb[0].mxu0
    %v664 = vadd.f32 0.0, %v663
    %v665 = vpop.f32.mrb[0].mxu0
    %666 = vdwg.mxu0
    %v667 = vadd.f32 %v578, %v649
    %v668 = vadd.f32 %v579, %v654
    %v669 = vadd.f32 %v580, %v659
    %v670 = vadd.f32 %v581, %v664
    %671 = vst [vmem:[#allocation2 + $0x60] sm:$0xff] %v667
    %672 = vst [vmem:[#allocation2 + $0x68] sm:$0xff] %v668
    %673 = vst [vmem:[#allocation2 + $0x70] sm:$0xff] %v669
    %674 = vst [vmem:[#allocation2 + $0x78] sm:$0xff] %v670
    %v675 = vld [vmem:[#allocation2] sm:$0xff]
    %v676 = vld [vmem:[#allocation2 + $0x8] sm:$0xff]
    %v677 = vld [vmem:[#allocation2 + $0x10] sm:$0xff]
    %v678 = vld [vmem:[#allocation2 + $0x18] sm:$0xff]
    %v679 = vld [vmem:[#allocation2 + $0x20] sm:$0xff]
    %v680 = vld [vmem:[#allocation2 + $0x28] sm:$0xff]
    %v681 = vld [vmem:[#allocation2 + $0x30] sm:$0xff]
    %v682 = vld [vmem:[#allocation2 + $0x38] sm:$0xff]
    %v683 = vld [vmem:[#allocation2 + $0x40] sm:$0xff]
    %v684 = vld [vmem:[#allocation2 + $0x48] sm:$0xff]
    %v685 = vld [vmem:[#allocation2 + $0x50] sm:$0xff]
    %v686 = vld [vmem:[#allocation2 + $0x58] sm:$0xff]
    %v687 = vld [vmem:[#allocation2 + $0x60] sm:$0xff]
    %v688 = vld [vmem:[#allocation2 + $0x68] sm:$0xff]
    %v689 = vld [vmem:[#allocation2 + $0x70] sm:$0xff]
    %v690 = vld [vmem:[#allocation2 + $0x78] sm:$0xff]
    %691 = vxpose.xlu0.b32.start [1/16] %v675, 128
    %692 = vxpose.xlu0.b32.cont [2/16] %v676, 128
    %693 = vxpose.xlu0.b32.cont [3/16] %v677, 128
    %694 = vxpose.xlu0.b32.cont [4/16] %v678, 128
    %695 = vxpose.xlu0.b32.cont [5/16] %v679, 128
    %696 = vxpose.xlu0.b32.cont [6/16] %v680, 128
    %697 = vxpose.xlu0.b32.cont [7/16] %v681, 128
    %698 = vxpose.xlu0.b32.cont [8/16] %v682, 128
    %699 = vxpose.xlu0.b32.cont [9/16] %v683, 128
    %700 = vxpose.xlu0.b32.cont [10/16] %v684, 128
    %701 = vxpose.xlu0.b32.cont [11/16] %v685, 128
    %702 = vxpose.xlu0.b32.cont [12/16] %v686, 128
    %703 = vxpose.xlu0.b32.cont [13/16] %v687, 128
    %704 = vxpose.xlu0.b32.cont [14/16] %v688, 128
    %705 = vxpose.xlu0.b32.cont [15/16] %v689, 128
    %706 = vxpose.xlu0.b32.end [16/16] %v690, 128
    %v707 = vpop.trf.xlu0
    %v708 = vpop.trf.xlu0
    %v709 = vpop.trf.xlu0
    %v710 = vpop.trf.xlu0
    %v711 = vpop.trf.xlu0
    %v712 = vpop.trf.xlu0
    %v713 = vpop.trf.xlu0
    %v714 = vpop.trf.xlu0
    %v715 = vpop.trf.xlu0
    %v716 = vpop.trf.xlu0
    %v717 = vpop.trf.xlu0
    %v718 = vpop.trf.xlu0
    %v719 = vpop.trf.xlu0
    %v720 = vpop.trf.xlu0
    %v721 = vpop.trf.xlu0
    %v722 = vpop.trf.xlu0
    %723 = vst [vmem:[#allocation8] sm:$0xff] %v707
    %724 = vst [vmem:[#allocation8 + $0x8] sm:$0xff] %v708
    %725 = vst [vmem:[#allocation8 + $0x10] sm:$0xff] %v709
    %726 = vst [vmem:[#allocation8 + $0x18] sm:$0xff] %v710
    %727 = vst [vmem:[#allocation8 + $0x20] sm:$0xff] %v711
    %728 = vst [vmem:[#allocation8 + $0x28] sm:$0xff] %v712
    %729 = vst [vmem:[#allocation8 + $0x30] sm:$0xff] %v713
    %730 = vst [vmem:[#allocation8 + $0x38] sm:$0xff] %v714
    %731 = vst [vmem:[#allocation8 + $0x40] sm:$0xff] %v715
    %732 = vst [vmem:[#allocation8 + $0x48] sm:$0xff] %v716
    %733 = vst [vmem:[#allocation8 + $0x50] sm:$0xff] %v717
    %734 = vst [vmem:[#allocation8 + $0x58] sm:$0xff] %v718
    %735 = vst [vmem:[#allocation8 + $0x60] sm:$0xff] %v719
    %736 = vst [vmem:[#allocation8 + $0x68] sm:$0xff] %v720
    %737 = vst [vmem:[#allocation8 + $0x70] sm:$0xff] %v721
    %738 = vst [vmem:[#allocation8 + $0x78] sm:$0xff] %v722
    // Predicated region
    $region18: #{tpu_custom_call.1} parent=1 // pred_check
      _
    $region19: #{tpu_custom_call.1} parent=1 // pred_check_branch
      %740 = sbr.rel (0) target = $region21
    $region20: #{tpu_custom_call.1} parent=1 // pred_region
      %s742 = ssub.s32 2048, 2048
      %743 = vsyncadd [#allocation5], %s742
      %s744 = sshll.u32 [#allocation8], 4
      %s745 = int_to_ptr.vmem [resolvable:$true] %s744
      %750 = dma.vmem_to_hbm [thread:$0]  %s745, 2048, %s2, [#allocation5], 128, 128, 8
    $region21: #{tpu_custom_call.1} parent=1 // pred_fallthru
      _
    // Predicated region
    $region22: #{tpu_custom_call.1} parent=1 // pred_check
      _
    $region23: #{tpu_custom_call.1} parent=1 // pred_check_branch
      %752 = sbr.rel (0) target = $region25
    $region24: #{tpu_custom_call.1} parent=1 // pred_region
      %753 = dma.done [#allocation5], 2048
    $region25: #{tpu_custom_call.1} parent=1 // pred_fallthru
      _
    %754 = vsyncpa [#allocation4], 1
    %755 = vsyncpa [#allocation7], 1
    %756 = vsyncpa [#allocation5], 1

</llo_original>
